<compile_context>
chip_gen: v6e
topology: v6e:2x2x1
jax: 0.10.0
libtpu: 0.0.40
codegen_flags: <defaults>
</compile_context>

<pallas_src>
import functools

import numpy as np
import jax
import jax.numpy as jnp
from jax.experimental import pallas as pl
from jax.experimental.pallas import tpu as pltpu

EPS = 1e-5


# --------------------------------------------------------------------------- kernel
def fused_layer_kernel(w_ref, x_ref, b_ref, g_ref, be_ref, o_ref, *,
                       use_bn, use_tanh, inv_m):
    # w: (Cout, K) bf16, x: (K, M) bf16, b/g/be: (Cout, 1) f32 -> o: (Cout, M) f32
    acc = jnp.dot(w_ref[...], x_ref[...], preferred_element_type=jnp.float32)
    acc = acc + b_ref[...]
    if use_bn:
        # Training-mode BatchNorm over M = N*OH*OW (per channel), biased variance.
        mean = jnp.sum(acc, axis=1, keepdims=True) * inv_m
        cent = acc - mean
        var = jnp.sum(cent * cent, axis=1, keepdims=True) * inv_m
        scale = g_ref[...] * jax.lax.rsqrt(var + EPS)     # rsqrt -> EUP slot
        acc = cent * scale + be_ref[...]                  # single fused affine
        acc = jnp.maximum(acc, 0.0)                       # ReLU
    if use_tanh:
        acc = jnp.tanh(acc)
    o_ref[...] = acc


# --------------------------------------------------------------------------- wrapper
def fused_layer(wmat, patches, bias, gamma, beta, *, use_bn, use_tanh):
    cout, K = wmat.shape
    _, M = patches.shape
    kern = functools.partial(fused_layer_kernel, use_bn=use_bn,
                             use_tanh=use_tanh, inv_m=1.0 / M)
    return pl.pallas_call(
        kern,
        out_shape=jax.ShapeDtypeStruct((cout, M), jnp.float32),
        grid_spec=pltpu.PrefetchScalarGridSpec(
            num_scalar_prefetch=0,
            grid=(1,),
            in_specs=[
                pl.BlockSpec((cout, K), lambda i: (0, 0)),
                pl.BlockSpec((K, M), lambda i: (0, 0)),
                pl.BlockSpec((cout, 1), lambda i: (0, 0)),
                pl.BlockSpec((cout, 1), lambda i: (0, 0)),
                pl.BlockSpec((cout, 1), lambda i: (0, 0)),
            ],
            out_specs=pl.BlockSpec((cout, M), lambda i: (0, 0)),
        ),
        compiler_params=pltpu.CompilerParams(dimension_semantics=("arbitrary",)),
    )(wmat, patches, bias, gamma, beta)


# --------------------------------------------------------------------------- XLA glue
def dilate_and_pad(x, stride, k, p):
    # x in channel-major layout (C, N, H, W); spatial dims last.
    C, N, H, W = x.shape
    if stride > 1:
        Hd, Wd = (H - 1) * stride + 1, (W - 1) * stride + 1
        xd = jnp.zeros((C, N, Hd, Wd), x.dtype).at[:, :, ::stride, ::stride].set(x)
    else:
        xd = x
    pad = k - 1 - p
    return jnp.pad(xd, ((0, 0), (0, 0), (pad, pad), (pad, pad)))


def im2col_cnhw(xp, k, OH, OW):
    # xp: (C, N, Hp, Wp) -> patches (C*k*k, N*OH*OW); no transpose needed.
    C, N, _, _ = xp.shape
    cols = [xp[:, :, ky:ky + OH, kx:kx + OW] for ky in range(k) for kx in range(k)]
    patches = jnp.stack(cols, axis=1)                    # (C, k*k, N, OH, OW)
    return patches.reshape(C * k * k, N * OH * OW)


# --------------------------------------------------------------------------- model
def build_generator_params(key, in_channel=16, out_channel=3, feature_map=32,
                           kernel_size=4, image_size=32):
    """Mirror of Generator.__init__ layer construction; weights precomputed once."""
    cfgs = []
    cfgs.append(dict(cin=in_channel, cout=feature_map, k=4, stride=1, pad=0,
                     bias=True, bn=True, act="relu"))
    size = 4
    cfgs.append(dict(cin=feature_map, cout=feature_map // 2, k=kernel_size,
                     stride=2, pad=1, bias=False, bn=True, act="relu"))
    feature_map //= 2
    size *= 2
    while size < image_size // 2:
        cfgs.append(dict(cin=feature_map, cout=feature_map // 2, k=4,
                         stride=2, pad=1, bias=False, bn=True, act="relu"))
        feature_map //= 2
        size *= 2
    cfgs.append(dict(cin=feature_map, cout=out_channel, k=4, stride=2, pad=1,
                     bias=False, bn=False, act="tanh"))

    params = []
    for cfg in cfgs:
        key, kw, kb = jax.random.split(key, 3)
        cin, cout, k = cfg["cin"], cfg["cout"], cfg["k"]
        # ConvTranspose2d weight layout (Cin, Cout, kH, kW)
        w = 0.1 * jax.random.normal(kw, (cin, cout, k, k), jnp.float32)
        if cfg["bias"]:
            b = 0.1 * jax.random.normal(kb, (cout,), jnp.float32)
        else:
            b = jnp.zeros((cout,), jnp.float32)
        gamma = jnp.ones((cout,), jnp.float32)
        beta = jnp.zeros((cout,), jnp.float32)

        # Precomputed (flip + transpose + reshape) weight matrix for the
        # (Cout, K) x (K, M) kernel matmul; bf16 for single-pass MXU, f32 accumulate.
        wmat = (w[:, :, ::-1, ::-1]
                .transpose(1, 0, 2, 3)                  # (Cout, Cin, k, k)
                .reshape(cout, cin * k * k)
                .astype(jnp.bfloat16))

        params.append(dict(cfg, w=w, b=b, gamma=gamma, beta=beta,
                           wmat=wmat,
                           b_col=b.reshape(cout, 1),
                           g_col=gamma.reshape(cout, 1),
                           be_col=beta.reshape(cout, 1)))
    return params


def generator_forward(params, z):
    # z: (N, Cin, 1, 1) NCHW -> channel-major CNHW for the whole stack.
    x = jnp.transpose(z, (1, 0, 2, 3))
    for L in params:
        _, N, H, W = x.shape
        k, s, p = L["k"], L["stride"], L["pad"]
        OH = (H - 1) * s - 2 * p + k
        OW = (W - 1) * s - 2 * p + k

        # ConvTranspose2d == dilate + pad(k-1-p) + conv with flipped kernel.
        xp = dilate_and_pad(x.astype(jnp.bfloat16), s, k, p)
        patches = im2col_cnhw(xp, k, OH, OW)                   # (Cin*k*k, N*OH*OW) bf16

        y = fused_layer(L["wmat"], patches, L["b_col"], L["g_col"], L["be_col"],
                        use_bn=L["bn"], use_tanh=(L["act"] == "tanh"))  # (Cout, M) f32
        x = y.reshape(L["cout"], N, OH, OW)                    # stay channel-major
    return jnp.transpose(x, (1, 0, 2, 3))                      # back to NCHW once


# --------------------------------------------------------------------------- reference
def reference_forward(params, z):
    # Pure-JAX reference with matching precision (bf16 operands, f32 accumulation).
    x = z
    for L in params:
        k, s, p = L["k"], L["stride"], L["pad"]
        w_conv = jnp.transpose(L["w"][:, :, ::-1, ::-1], (1, 0, 2, 3))  # (Cout, Cin, k, k)
        y = jax.lax.conv_general_dilated(
            x.astype(jnp.bfloat16), w_conv.astype(jnp.bfloat16),
            window_strides=(1, 1),
            padding=[(k - 1 - p, k - 1 - p)] * 2,
            lhs_dilation=(s, s),
            dimension_numbers=("NCHW", "OIHW", "NCHW"),
            preferred_element_type=jnp.float32,
        )
        y = y + L["b"].reshape(1, -1, 1, 1)
        if L["bn"]:
            mean = y.mean(axis=(0, 2, 3), keepdims=True)
            var = jnp.square(y - mean).mean(axis=(0, 2, 3), keepdims=True)
            y = (y - mean) * jax.lax.rsqrt(var + EPS)
            y = y * L["gamma"].reshape(1, -1, 1, 1) + L["beta"].reshape(1, -1, 1, 1)
            y = jnp.maximum(y, 0.0)
        if L["act"] == "tanh":
            y = jnp.tanh(y)
        x = y
    return x


if __name__ == "__main__":
    key = jax.random.PRNGKey(0)
    kp, kz = jax.random.split(key)

    # Small config consistent with the module: Generator(in_channel=16, out_channel=3,
    # feature_map=32, kernel_size=4, image_size=32); latent z is (N, in_channel, 1, 1).
    params = build_generator_params(kp, in_channel=16, out_channel=3,
                                    feature_map=32, kernel_size=4, image_size=32)
    z = jax.random.normal(kz, (2, 16, 1, 1), jnp.float32)

    fwd = jax.jit(functools.partial(generator_forward, params))
    out = jax.block_until_ready(fwd(z))
    assert out.shape == (2, 3, 32, 32), out.shape

    ref = jax.block_until_ready(reference_forward(params, z))
    np.testing.assert_allclose(np.asarray(out), np.asarray(ref), rtol=1e-2, atol=1e-2)

    print("KERNEL_OK")
</pallas_src>

<mosaic_0001>
module attributes {stable_mosaic.version = 11 : i64} {
  func.func @fused_layer_kernel(%arg0: i32, %arg1: memref<32x256xbf16, #tpu.memory_space<vmem>>, %arg2: memref<256x32xbf16, #tpu.memory_space<vmem>>, %arg3: memref<32x1xf32, #tpu.memory_space<vmem>>, %arg4: memref<32x1xf32, #tpu.memory_space<vmem>>, %arg5: memref<32x1xf32, #tpu.memory_space<vmem>>, %arg6: memref<32x32xf32, #tpu.memory_space<vmem>>) attributes {dimension_semantics = [#tpu.dimension_semantics<arbitrary>], iteration_bounds = array<i64: 1>, scalar_prefetch = 0 : i64, scratch_operands = 0 : i64, tpu.core_type = #tpu.core_type<tc>, window_params = [{pipeline_mode = #tpu.pipeline_mode<synchronous>, transform_indices = @transform_0, window_bounds = array<i64: 32, 256>}, {pipeline_mode = #tpu.pipeline_mode<synchronous>, transform_indices = @transform_1, window_bounds = array<i64: 256, 32>}, {pipeline_mode = #tpu.pipeline_mode<synchronous>, transform_indices = @transform_2, window_bounds = array<i64: 32, 1>}, {pipeline_mode = #tpu.pipeline_mode<synchronous>, transform_indices = @transform_3, window_bounds = array<i64: 32, 1>}, {pipeline_mode = #tpu.pipeline_mode<synchronous>, transform_indices = @transform_4, window_bounds = array<i64: 32, 1>}, {pipeline_mode = #tpu.pipeline_mode<synchronous>, transform_indices = @transform_5, window_bounds = array<i64: 32, 32>}]} {
    %c0 = arith.constant 0 : index
    %c0_0 = arith.constant 0 : index
    %0 = vector.load %arg1[%c0, %c0_0] : memref<32x256xbf16, #tpu.memory_space<vmem>>, vector<32x256xbf16>
    %c0_1 = arith.constant 0 : index
    %c0_2 = arith.constant 0 : index
    %1 = vector.load %arg2[%c0_1, %c0_2] : memref<256x32xbf16, #tpu.memory_space<vmem>>, vector<256x32xbf16>
    %cst = arith.constant dense<0.000000e+00> : vector<32x32xf32>
    %2 = tpu.matmul %0, %1, %cst {dimension_numbers = #tpu.dot_dimension_numbers<[1], [0], [0], [1], [0, 0, 1, 1], [], []>} : vector<32x256xbf16>, vector<256x32xbf16>, vector<32x32xf32> -> vector<32x32xf32>
    %c0_3 = arith.constant 0 : index
    %c0_4 = arith.constant 0 : index
    %3 = vector.load %arg3[%c0_3, %c0_4] : memref<32x1xf32, #tpu.memory_space<vmem>>, vector<32x1xf32>
    %4 = vector.broadcast %3 : vector<32x1xf32> to vector<32x32xf32>
    %5 = arith.addf %2, %4 : vector<32x32xf32>
    %cst_5 = arith.constant dense<0.000000e+00> : vector<32xf32>
    %6 = vector.multi_reduction <add>, %5, %cst_5 [1] : vector<32x32xf32> to vector<32xf32>
    %7 = vector.shape_cast %6 : vector<32xf32> to vector<32x1xf32>
    %cst_6 = arith.constant 3.125000e-02 : f32
    %8 = vector.broadcast %cst_6 : f32 to vector<32x1xf32>
    %9 = arith.mulf %7, %8 : vector<32x1xf32>
    %10 = vector.broadcast %9 : vector<32x1xf32> to vector<32x32xf32>
    %11 = arith.subf %5, %10 : vector<32x32xf32>
    %12 = arith.mulf %11, %11 : vector<32x32xf32>
    %cst_7 = arith.constant dense<0.000000e+00> : vector<32xf32>
    %13 = vector.multi_reduction <add>, %12, %cst_7 [1] : vector<32x32xf32> to vector<32xf32>
    %14 = vector.shape_cast %13 : vector<32xf32> to vector<32x1xf32>
    %cst_8 = arith.constant 3.125000e-02 : f32
    %15 = vector.broadcast %cst_8 : f32 to vector<32x1xf32>
    %16 = arith.mulf %14, %15 : vector<32x1xf32>
    %c0_9 = arith.constant 0 : index
    %c0_10 = arith.constant 0 : index
    %17 = vector.load %arg4[%c0_9, %c0_10] : memref<32x1xf32, #tpu.memory_space<vmem>>, vector<32x1xf32>
    %cst_11 = arith.constant 9.99999974E-6 : f32
    %18 = vector.broadcast %cst_11 : f32 to vector<32x1xf32>
    %19 = arith.addf %16, %18 : vector<32x1xf32>
    %20 = math.rsqrt %19 : vector<32x1xf32>
    %21 = arith.mulf %17, %20 : vector<32x1xf32>
    %22 = vector.broadcast %21 : vector<32x1xf32> to vector<32x32xf32>
    %23 = arith.mulf %11, %22 : vector<32x32xf32>
    %c0_12 = arith.constant 0 : index
    %c0_13 = arith.constant 0 : index
    %24 = vector.load %arg5[%c0_12, %c0_13] : memref<32x1xf32, #tpu.memory_space<vmem>>, vector<32x1xf32>
    %25 = vector.broadcast %24 : vector<32x1xf32> to vector<32x32xf32>
    %26 = arith.addf %23, %25 : vector<32x32xf32>
    %cst_14 = arith.constant 0.000000e+00 : f32
    %27 = vector.broadcast %cst_14 : f32 to vector<32x32xf32>
    %28 = arith.maximumf %26, %27 : vector<32x32xf32>
    %c0_15 = arith.constant 0 : index
    %c0_16 = arith.constant 0 : index
    %29 = vector.load %arg6[%c0_15, %c0_16] : memref<32x32xf32, #tpu.memory_space<vmem>>, vector<32x32xf32>
    tpu.vector_store %arg6[%c0_15, %c0_16], %28 {strides = array<i32>} : memref<32x32xf32, #tpu.memory_space<vmem>>, vector<32x32xf32>,
    return
  }
  func.func @transform_0(%arg0: i32) -> (i32, i32) {
    %c0_i32 = arith.constant 0 : i32
    %c0_i32_0 = arith.constant 0 : i32
    %c0_i32_1 = arith.constant 0 : i32
    return %c0_i32, %c0_i32_0 : i32, i32
  }
  func.func @transform_1(%arg0: i32) -> (i32, i32) {
    %c0_i32 = arith.constant 0 : i32
    %c0_i32_0 = arith.constant 0 : i32
    %c0_i32_1 = arith.constant 0 : i32
    return %c0_i32, %c0_i32_0 : i32, i32
  }
  func.func @transform_2(%arg0: i32) -> (i32, i32) {
    %c0_i32 = arith.constant 0 : i32
    %c0_i32_0 = arith.constant 0 : i32
    %c0_i32_1 = arith.constant 0 : i32
    return %c0_i32, %c0_i32_0 : i32, i32
  }
  func.func @transform_3(%arg0: i32) -> (i32, i32) {
    %c0_i32 = arith.constant 0 : i32
    %c0_i32_0 = arith.constant 0 : i32
    %c0_i32_1 = arith.constant 0 : i32
    return %c0_i32, %c0_i32_0 : i32, i32
  }
  func.func @transform_4(%arg0: i32) -> (i32, i32) {
    %c0_i32 = arith.constant 0 : i32
    %c0_i32_0 = arith.constant 0 : i32
    %c0_i32_1 = arith.constant 0 : i32
    return %c0_i32, %c0_i32_0 : i32, i32
  }
  func.func @transform_5(%arg0: i32) -> (i32, i32) {
    %c0_i32 = arith.constant 0 : i32
    %c0_i32_0 = arith.constant 0 : i32
    %c0_i32_1 = arith.constant 0 : i32
    return %c0_i32, %c0_i32_0 : i32, i32
  }
}

module attributes {stable_mosaic.version = 11 : i64} {
  func.func @fused_layer_kernel(%arg0: i32, %arg1: memref<16x512xbf16, #tpu.memory_space<vmem>>, %arg2: memref<512x128xbf16, #tpu.memory_space<vmem>>, %arg3: memref<16x1xf32, #tpu.memory_space<vmem>>, %arg4: memref<16x1xf32, #tpu.memory_space<vmem>>, %arg5: memref<16x1xf32, #tpu.memory_space<vmem>>, %arg6: memref<16x128xf32, #tpu.memory_space<vmem>>) attributes {dimension_semantics = [#tpu.dimension_semantics<arbitrary>], iteration_bounds = array<i64: 1>, scalar_prefetch = 0 : i64, scratch_operands = 0 : i64, tpu.core_type = #tpu.core_type<tc>, window_params = [{pipeline_mode = #tpu.pipeline_mode<synchronous>, transform_indices = @transform_0, window_bounds = array<i64: 16, 512>}, {pipeline_mode = #tpu.pipeline_mode<synchronous>, transform_indices = @transform_1, window_bounds = array<i64: 512, 128>}, {pipeline_mode = #tpu.pipeline_mode<synchronous>, transform_indices = @transform_2, window_bounds = array<i64: 16, 1>}, {pipeline_mode = #tpu.pipeline_mode<synchronous>, transform_indices = @transform_3, window_bounds = array<i64: 16, 1>}, {pipeline_mode = #tpu.pipeline_mode<synchronous>, transform_indices = @transform_4, window_bounds = array<i64: 16, 1>}, {pipeline_mode = #tpu.pipeline_mode<synchronous>, transform_indices = @transform_5, window_bounds = array<i64: 16, 128>}]} {
    %c0 = arith.constant 0 : index
    %c0_0 = arith.constant 0 : index
    %0 = vector.load %arg1[%c0, %c0_0] : memref<16x512xbf16, #tpu.memory_space<vmem>>, vector<16x512xbf16>
    %c0_1 = arith.constant 0 : index
    %c0_2 = arith.constant 0 : index
    %1 = vector.load %arg2[%c0_1, %c0_2] : memref<512x128xbf16, #tpu.memory_space<vmem>>, vector<512x128xbf16>
    %cst = arith.constant dense<0.000000e+00> : vector<16x128xf32>
    %2 = tpu.matmul %0, %1, %cst {dimension_numbers = #tpu.dot_dimension_numbers<[1], [0], [0], [1], [0, 0, 1, 1], [], []>} : vector<16x512xbf16>, vector<512x128xbf16>, vector<16x128xf32> -> vector<16x128xf32>
    %c0_3 = arith.constant 0 : index
    %c0_4 = arith.constant 0 : index
    %3 = vector.load %arg3[%c0_3, %c0_4] : memref<16x1xf32, #tpu.memory_space<vmem>>, vector<16x1xf32>
    %4 = vector.broadcast %3 : vector<16x1xf32> to vector<16x128xf32>
    %5 = arith.addf %2, %4 : vector<16x128xf32>
    %cst_5 = arith.constant dense<0.000000e+00> : vector<16xf32>
    %6 = vector.multi_reduction <add>, %5, %cst_5 [1] : vector<16x128xf32> to vector<16xf32>
    %7 = vector.shape_cast %6 : vector<16xf32> to vector<16x1xf32>
    %cst_6 = arith.constant 7.812500e-03 : f32
    %8 = vector.broadcast %cst_6 : f32 to vector<16x1xf32>
    %9 = arith.mulf %7, %8 : vector<16x1xf32>
    %10 = vector.broadcast %9 : vector<16x1xf32> to vector<16x128xf32>
    %11 = arith.subf %5, %10 : vector<16x128xf32>
    %12 = arith.mulf %11, %11 : vector<16x128xf32>
    %cst_7 = arith.constant dense<0.000000e+00> : vector<16xf32>
    %13 = vector.multi_reduction <add>, %12, %cst_7 [1] : vector<16x128xf32> to vector<16xf32>
    %14 = vector.shape_cast %13 : vector<16xf32> to vector<16x1xf32>
    %cst_8 = arith.constant 7.812500e-03 : f32
    %15 = vector.broadcast %cst_8 : f32 to vector<16x1xf32>
    %16 = arith.mulf %14, %15 : vector<16x1xf32>
    %c0_9 = arith.constant 0 : index
    %c0_10 = arith.constant 0 : index
    %17 = vector.load %arg4[%c0_9, %c0_10] : memref<16x1xf32, #tpu.memory_space<vmem>>, vector<16x1xf32>
    %cst_11 = arith.constant 9.99999974E-6 : f32
    %18 = vector.broadcast %cst_11 : f32 to vector<16x1xf32>
    %19 = arith.addf %16, %18 : vector<16x1xf32>
    %20 = math.rsqrt %19 : vector<16x1xf32>
    %21 = arith.mulf %17, %20 : vector<16x1xf32>
    %22 = vector.broadcast %21 : vector<16x1xf32> to vector<16x128xf32>
    %23 = arith.mulf %11, %22 : vector<16x128xf32>
    %c0_12 = arith.constant 0 : index
    %c0_13 = arith.constant 0 : index
    %24 = vector.load %arg5[%c0_12, %c0_13] : memref<16x1xf32, #tpu.memory_space<vmem>>, vector<16x1xf32>
    %25 = vector.broadcast %24 : vector<16x1xf32> to vector<16x128xf32>
    %26 = arith.addf %23, %25 : vector<16x128xf32>
    %cst_14 = arith.constant 0.000000e+00 : f32
    %27 = vector.broadcast %cst_14 : f32 to vector<16x128xf32>
    %28 = arith.maximumf %26, %27 : vector<16x128xf32>
    %c0_15 = arith.constant 0 : index
    %c0_16 = arith.constant 0 : index
    %29 = vector.load %arg6[%c0_15, %c0_16] : memref<16x128xf32, #tpu.memory_space<vmem>>, vector<16x128xf32>
    tpu.vector_store %arg6[%c0_15, %c0_16], %28 {strides = array<i32>} : memref<16x128xf32, #tpu.memory_space<vmem>>, vector<16x128xf32>,
    return
  }
  func.func @transform_0(%arg0: i32) -> (i32, i32) {
    %c0_i32 = arith.constant 0 : i32
    %c0_i32_0 = arith.constant 0 : i32
    %c0_i32_1 = arith.constant 0 : i32
    return %c0_i32, %c0_i32_0 : i32, i32
  }
  func.func @transform_1(%arg0: i32) -> (i32, i32) {
    %c0_i32 = arith.constant 0 : i32
    %c0_i32_0 = arith.constant 0 : i32
    %c0_i32_1 = arith.constant 0 : i32
    return %c0_i32, %c0_i32_0 : i32, i32
  }
  func.func @transform_2(%arg0: i32) -> (i32, i32) {
    %c0_i32 = arith.constant 0 : i32
    %c0_i32_0 = arith.constant 0 : i32
    %c0_i32_1 = arith.constant 0 : i32
    return %c0_i32, %c0_i32_0 : i32, i32
  }
  func.func @transform_3(%arg0: i32) -> (i32, i32) {
    %c0_i32 = arith.constant 0 : i32
    %c0_i32_0 = arith.constant 0 : i32
    %c0_i32_1 = arith.constant 0 : i32
    return %c0_i32, %c0_i32_0 : i32, i32
  }
  func.func @transform_4(%arg0: i32) -> (i32, i32) {
    %c0_i32 = arith.constant 0 : i32
    %c0_i32_0 = arith.constant 0 : i32
    %c0_i32_1 = arith.constant 0 : i32
    return %c0_i32, %c0_i32_0 : i32, i32
  }
  func.func @transform_5(%arg0: i32) -> (i32, i32) {
    %c0_i32 = arith.constant 0 : i32
    %c0_i32_0 = arith.constant 0 : i32
    %c0_i32_1 = arith.constant 0 : i32
    return %c0_i32, %c0_i32_0 : i32, i32
  }
}

module attributes {stable_mosaic.version = 11 : i64} {
  func.func @fused_layer_kernel(%arg0: i32, %arg1: memref<8x256xbf16, #tpu.memory_space<vmem>>, %arg2: memref<256x512xbf16, #tpu.memory_space<vmem>>, %arg3: memref<8x1xf32, #tpu.memory_space<vmem>>, %arg4: memref<8x1xf32, #tpu.memory_space<vmem>>, %arg5: memref<8x1xf32, #tpu.memory_space<vmem>>, %arg6: memref<8x512xf32, #tpu.memory_space<vmem>>) attributes {dimension_semantics = [#tpu.dimension_semantics<arbitrary>], iteration_bounds = array<i64: 1>, scalar_prefetch = 0 : i64, scratch_operands = 0 : i64, tpu.core_type = #tpu.core_type<tc>, window_params = [{pipeline_mode = #tpu.pipeline_mode<synchronous>, transform_indices = @transform_0, window_bounds = array<i64: 8, 256>}, {pipeline_mode = #tpu.pipeline_mode<synchronous>, transform_indices = @transform_1, window_bounds = array<i64: 256, 512>}, {pipeline_mode = #tpu.pipeline_mode<synchronous>, transform_indices = @transform_2, window_bounds = array<i64: 8, 1>}, {pipeline_mode = #tpu.pipeline_mode<synchronous>, transform_indices = @transform_3, window_bounds = array<i64: 8, 1>}, {pipeline_mode = #tpu.pipeline_mode<synchronous>, transform_indices = @transform_4, window_bounds = array<i64: 8, 1>}, {pipeline_mode = #tpu.pipeline_mode<synchronous>, transform_indices = @transform_5, window_bounds = array<i64: 8, 512>}]} {
    %c0 = arith.constant 0 : index
    %c0_0 = arith.constant 0 : index
    %0 = vector.load %arg1[%c0, %c0_0] : memref<8x256xbf16, #tpu.memory_space<vmem>>, vector<8x256xbf16>
    %c0_1 = arith.constant 0 : index
    %c0_2 = arith.constant 0 : index
    %1 = vector.load %arg2[%c0_1, %c0_2] : memref<256x512xbf16, #tpu.memory_space<vmem>>, vector<256x512xbf16>
    %cst = arith.constant dense<0.000000e+00> : vector<8x512xf32>
    %2 = tpu.matmul %0, %1, %cst {dimension_numbers = #tpu.dot_dimension_numbers<[1], [0], [0], [1], [0, 0, 1, 1], [], []>} : vector<8x256xbf16>, vector<256x512xbf16>, vector<8x512xf32> -> vector<8x512xf32>
    %c0_3 = arith.constant 0 : index
    %c0_4 = arith.constant 0 : index
    %3 = vector.load %arg3[%c0_3, %c0_4] : memref<8x1xf32, #tpu.memory_space<vmem>>, vector<8x1xf32>
    %4 = vector.broadcast %3 : vector<8x1xf32> to vector<8x512xf32>
    %5 = arith.addf %2, %4 : vector<8x512xf32>
    %cst_5 = arith.constant dense<0.000000e+00> : vector<8xf32>
    %6 = vector.multi_reduction <add>, %5, %cst_5 [1] : vector<8x512xf32> to vector<8xf32>
    %7 = vector.shape_cast %6 : vector<8xf32> to vector<8x1xf32>
    %cst_6 = arith.constant 0.001953125 : f32
    %8 = vector.broadcast %cst_6 : f32 to vector<8x1xf32>
    %9 = arith.mulf %7, %8 : vector<8x1xf32>
    %10 = vector.broadcast %9 : vector<8x1xf32> to vector<8x512xf32>
    %11 = arith.subf %5, %10 : vector<8x512xf32>
    %12 = arith.mulf %11, %11 : vector<8x512xf32>
    %cst_7 = arith.constant dense<0.000000e+00> : vector<8xf32>
    %13 = vector.multi_reduction <add>, %12, %cst_7 [1] : vector<8x512xf32> to vector<8xf32>
    %14 = vector.shape_cast %13 : vector<8xf32> to vector<8x1xf32>
    %cst_8 = arith.constant 0.001953125 : f32
    %15 = vector.broadcast %cst_8 : f32 to vector<8x1xf32>
    %16 = arith.mulf %14, %15 : vector<8x1xf32>
    %c0_9 = arith.constant 0 : index
    %c0_10 = arith.constant 0 : index
    %17 = vector.load %arg4[%c0_9, %c0_10] : memref<8x1xf32, #tpu.memory_space<vmem>>, vector<8x1xf32>
    %cst_11 = arith.constant 9.99999974E-6 : f32
    %18 = vector.broadcast %cst_11 : f32 to vector<8x1xf32>
    %19 = arith.addf %16, %18 : vector<8x1xf32>
    %20 = math.rsqrt %19 : vector<8x1xf32>
    %21 = arith.mulf %17, %20 : vector<8x1xf32>
    %22 = vector.broadcast %21 : vector<8x1xf32> to vector<8x512xf32>
    %23 = arith.mulf %11, %22 : vector<8x512xf32>
    %c0_12 = arith.constant 0 : index
    %c0_13 = arith.constant 0 : index
    %24 = vector.load %arg5[%c0_12, %c0_13] : memref<8x1xf32, #tpu.memory_space<vmem>>, vector<8x1xf32>
    %25 = vector.broadcast %24 : vector<8x1xf32> to vector<8x512xf32>
    %26 = arith.addf %23, %25 : vector<8x512xf32>
    %cst_14 = arith.constant 0.000000e+00 : f32
    %27 = vector.broadcast %cst_14 : f32 to vector<8x512xf32>
    %28 = arith.maximumf %26, %27 : vector<8x512xf32>
    %c0_15 = arith.constant 0 : index
    %c0_16 = arith.constant 0 : index
    %29 = vector.load %arg6[%c0_15, %c0_16] : memref<8x512xf32, #tpu.memory_space<vmem>>, vector<8x512xf32>
    tpu.vector_store %arg6[%c0_15, %c0_16], %28 {strides = array<i32>} : memref<8x512xf32, #tpu.memory_space<vmem>>, vector<8x512xf32>,
    return
  }
  func.func @transform_0(%arg0: i32) -> (i32, i32) {
    %c0_i32 = arith.constant 0 : i32
    %c0_i32_0 = arith.constant 0 : i32
    %c0_i32_1 = arith.constant 0 : i32
    return %c0_i32, %c0_i32_0 : i32, i32
  }
  func.func @transform_1(%arg0: i32) -> (i32, i32) {
    %c0_i32 = arith.constant 0 : i32
    %c0_i32_0 = arith.constant 0 : i32
    %c0_i32_1 = arith.constant 0 : i32
    return %c0_i32, %c0_i32_0 : i32, i32
  }
  func.func @transform_2(%arg0: i32) -> (i32, i32) {
    %c0_i32 = arith.constant 0 : i32
    %c0_i32_0 = arith.constant 0 : i32
    %c0_i32_1 = arith.constant 0 : i32
    return %c0_i32, %c0_i32_0 : i32, i32
  }
  func.func @transform_3(%arg0: i32) -> (i32, i32) {
    %c0_i32 = arith.constant 0 : i32
    %c0_i32_0 = arith.constant 0 : i32
    %c0_i32_1 = arith.constant 0 : i32
    return %c0_i32, %c0_i32_0 : i32, i32
  }
  func.func @transform_4(%arg0: i32) -> (i32, i32) {
    %c0_i32 = arith.constant 0 : i32
    %c0_i32_0 = arith.constant 0 : i32
    %c0_i32_1 = arith.constant 0 : i32
    return %c0_i32, %c0_i32_0 : i32, i32
  }
  func.func @transform_5(%arg0: i32) -> (i32, i32) {
    %c0_i32 = arith.constant 0 : i32
    %c0_i32_0 = arith.constant 0 : i32
    %c0_i32_1 = arith.constant 0 : i32
    return %c0_i32, %c0_i32_0 : i32, i32
  }
}

module attributes {stable_mosaic.version = 11 : i64} {
  func.func @fused_layer_kernel(%arg0: i32, %arg1: memref<3x128xbf16, #tpu.memory_space<vmem>>, %arg2: memref<128x2048xbf16, #tpu.memory_space<vmem>>, %arg3: memref<3x1xf32, #tpu.memory_space<vmem>>, %arg4: memref<3x1xf32, #tpu.memory_space<vmem>>, %arg5: memref<3x1xf32, #tpu.memory_space<vmem>>, %arg6: memref<3x2048xf32, #tpu.memory_space<vmem>>) attributes {dimension_semantics = [#tpu.dimension_semantics<arbitrary>], iteration_bounds = array<i64: 1>, scalar_prefetch = 0 : i64, scratch_operands = 0 : i64, tpu.core_type = #tpu.core_type<tc>, window_params = [{pipeline_mode = #tpu.pipeline_mode<synchronous>, transform_indices = @transform_0, window_bounds = array<i64: 3, 128>}, {pipeline_mode = #tpu.pipeline_mode<synchronous>, transform_indices = @transform_1, window_bounds = array<i64: 128, 2048>}, {pipeline_mode = #tpu.pipeline_mode<synchronous>, transform_indices = @transform_2, window_bounds = array<i64: 3, 1>}, {pipeline_mode = #tpu.pipeline_mode<synchronous>, transform_indices = @transform_3, window_bounds = array<i64: 3, 1>}, {pipeline_mode = #tpu.pipeline_mode<synchronous>, transform_indices = @transform_4, window_bounds = array<i64: 3, 1>}, {pipeline_mode = #tpu.pipeline_mode<synchronous>, transform_indices = @transform_5, window_bounds = array<i64: 3, 2048>}]} {
    %c0 = arith.constant 0 : index
    %c0_0 = arith.constant 0 : index
    %0 = vector.load %arg1[%c0, %c0_0] : memref<3x128xbf16, #tpu.memory_space<vmem>>, vector<3x128xbf16>
    %c0_1 = arith.constant 0 : index
    %c0_2 = arith.constant 0 : index
    %1 = vector.load %arg2[%c0_1, %c0_2] : memref<128x2048xbf16, #tpu.memory_space<vmem>>, vector<128x2048xbf16>
    %cst = arith.constant dense<0.000000e+00> : vector<3x2048xf32>
    %2 = tpu.matmul %0, %1, %cst {dimension_numbers = #tpu.dot_dimension_numbers<[1], [0], [0], [1], [0, 0, 1, 1], [], []>} : vector<3x128xbf16>, vector<128x2048xbf16>, vector<3x2048xf32> -> vector<3x2048xf32>
    %c0_3 = arith.constant 0 : index
    %c0_4 = arith.constant 0 : index
    %3 = vector.load %arg3[%c0_3, %c0_4] : memref<3x1xf32, #tpu.memory_space<vmem>>, vector<3x1xf32>
    %4 = vector.broadcast %3 : vector<3x1xf32> to vector<3x2048xf32>
    %5 = arith.addf %2, %4 : vector<3x2048xf32>
    %6 = math.tanh %5 : vector<3x2048xf32>
    %c0_5 = arith.constant 0 : index
    %c0_6 = arith.constant 0 : index
    %7 = vector.load %arg6[%c0_5, %c0_6] : memref<3x2048xf32, #tpu.memory_space<vmem>>, vector<3x2048xf32>
    tpu.vector_store %arg6[%c0_5, %c0_6], %6 {strides = array<i32>} : memref<3x2048xf32, #tpu.memory_space<vmem>>, vector<3x2048xf32>,
    return
  }
  func.func @transform_0(%arg0: i32) -> (i32, i32) {
    %c0_i32 = arith.constant 0 : i32
    %c0_i32_0 = arith.constant 0 : i32
    %c0_i32_1 = arith.constant 0 : i32
    return %c0_i32, %c0_i32_0 : i32, i32
  }
  func.func @transform_1(%arg0: i32) -> (i32, i32) {
    %c0_i32 = arith.constant 0 : i32
    %c0_i32_0 = arith.constant 0 : i32
    %c0_i32_1 = arith.constant 0 : i32
    return %c0_i32, %c0_i32_0 : i32, i32
  }
  func.func @transform_2(%arg0: i32) -> (i32, i32) {
    %c0_i32 = arith.constant 0 : i32
    %c0_i32_0 = arith.constant 0 : i32
    %c0_i32_1 = arith.constant 0 : i32
    return %c0_i32, %c0_i32_0 : i32, i32
  }
  func.func @transform_3(%arg0: i32) -> (i32, i32) {
    %c0_i32 = arith.constant 0 : i32
    %c0_i32_0 = arith.constant 0 : i32
    %c0_i32_1 = arith.constant 0 : i32
    return %c0_i32, %c0_i32_0 : i32, i32
  }
  func.func @transform_4(%arg0: i32) -> (i32, i32) {
    %c0_i32 = arith.constant 0 : i32
    %c0_i32_0 = arith.constant 0 : i32
    %c0_i32_1 = arith.constant 0 : i32
    return %c0_i32, %c0_i32_0 : i32, i32
  }
  func.func @transform_5(%arg0: i32) -> (i32, i32) {
    %c0_i32 = arith.constant 0 : i32
    %c0_i32_0 = arith.constant 0 : i32
    %c0_i32_1 = arith.constant 0 : i32
    return %c0_i32, %c0_i32_0 : i32, i32
  }
}

</mosaic_0001>

<llo_original>
// kernel: generator_forward.4
$region0: #{generator_forward.4}
  #allocation0 [shape = 'u32[]', space=smem, size = 0x4, offset = 0x4, fixed_abs, tag = 'smem constant byte address 0x4 - core index']
  #allocation1 [shape = 'u32[144,128]{1,0:T(1,128)}', space=vmem, size = 0x12000, scoped, tag = 'internal scratch']
  %s0 = inlined_call_operand.hbm [shape: bf16[32,256], index: 0, kind: input, shape index: {}]
  %s1 = inlined_call_operand.vmem [shape: bf16[256,32], index: 1, kind: input, shape index: {}]
  %s2 = inlined_call_operand.hbm [shape: f32[32,1], index: 2, kind: input, shape index: {}]
  %s3 = inlined_call_operand.vmem [shape: f32[32,1], index: 3, kind: input, shape index: {}]
  %s4 = inlined_call_operand.vmem [shape: f32[32,1], index: 4, kind: input, shape index: {}]
  %s5 = inlined_call_operand.vmem [shape: f32[32,32], index: 5, kind: output, shape index: {}]
  %s6 = sld [smem:[#allocation0]]
  $region38: #{generator_forward.4} parent=0
    _
  %s8 = ssub.s32 1, %s6
  %s9 = scalar_select 0, %s8, %s6
  $region1: #{generator_forward.4} parent=0
    #allocation2 [shape = 'u8[16384]{0}', space=vmem, size = 0x4000, scoped, tag = 'input window, operand 0, single buffered']
    #allocation3 [shape = 's32[1]{0}', space=sflag, size = 0x4, scoped, tag = 'scoped memory for generator_forward.4']
    #allocation4 [shape = 'u8[16384]{0}', space=vmem, size = 0x4000, scoped, tag = 'input window, operand 2, single buffered']
    #allocation5 [shape = 's32[1]{0}', space=sflag, size = 0x4, scoped, tag = 'scoped memory for generator_forward.4']
    %10 = vsyncpa [#allocation3], 0
    %11 = vsyncpa [#allocation5], 0
    // Predicated region
    $region2: #{generator_forward.4} parent=1 // pred_check
      _
    $region3: #{generator_forward.4} parent=1 // pred_check_branch
      %13 = sbr.rel (0) target = $region5
    $region4: #{generator_forward.4} parent=1 // pred_region
      %s15 = ssub.s32 512, 512
      %16 = vsyncadd [#allocation3], %s15
      %s17 = sshll.u32 [#allocation2], 4
      %s18 = int_to_ptr.vmem [resolvable:$true] %s17
      %23 = dma.hbm_to_vmem [thread:$0]  %s0, 512, %s18, [#allocation3], 128, 128, 8
    $region5: #{generator_forward.4} parent=1 // pred_fallthru
      _
    // Predicated region
    $region6: #{generator_forward.4} parent=1 // pred_check
      _
    $region7: #{generator_forward.4} parent=1 // pred_check_branch
      %25 = sbr.rel (0) target = $region9
    $region8: #{generator_forward.4} parent=1 // pred_region
      _
    $region9: #{generator_forward.4} parent=1 // pred_fallthru
      _
    // Predicated region
    $region10: #{generator_forward.4} parent=1 // pred_check
      _
    $region11: #{generator_forward.4} parent=1 // pred_check_branch
      %27 = sbr.rel (0) target = $region13
    $region12: #{generator_forward.4} parent=1 // pred_region
      %s29 = ssub.s32 512, 512
      %30 = vsyncadd [#allocation5], %s29
      %s31 = sshll.u32 [#allocation4], 4
      %s32 = int_to_ptr.vmem [resolvable:$true] %s31
      %37 = dma.hbm_to_vmem [thread:$0]  %s2, 512, %s32, [#allocation5], 128, 128, 8
    $region13: #{generator_forward.4} parent=1 // pred_fallthru
      _
    // Predicated region
    $region14: #{generator_forward.4} parent=1 // pred_check
      _
    $region15: #{generator_forward.4} parent=1 // pred_check_branch
      %39 = sbr.rel (0) target = $region17
    $region16: #{generator_forward.4} parent=1 // pred_region
      _
    $region17: #{generator_forward.4} parent=1 // pred_fallthru
      _
    // Predicated region
    $region18: #{generator_forward.4} parent=1 // pred_check
      _
    $region19: #{generator_forward.4} parent=1 // pred_check_branch
      %41 = sbr.rel (0) target = $region21
    $region20: #{generator_forward.4} parent=1 // pred_region
      _
    $region21: #{generator_forward.4} parent=1 // pred_fallthru
      _
    // Predicated region
    $region22: #{generator_forward.4} parent=1 // pred_check
      _
    $region23: #{generator_forward.4} parent=1 // pred_check_branch
      %43 = sbr.rel (0) target = $region25
    $region24: #{generator_forward.4} parent=1 // pred_region
      %44 = dma.done [#allocation3], 512
    $region25: #{generator_forward.4} parent=1 // pred_fallthru
      _
    // Predicated region
    $region26: #{generator_forward.4} parent=1 // pred_check
      _
    $region27: #{generator_forward.4} parent=1 // pred_check_branch
      %46 = sbr.rel (0) target = $region29
    $region28: #{generator_forward.4} parent=1 // pred_region
      %47 = dma.done [#allocation5], 512
    $region29: #{generator_forward.4} parent=1 // pred_fallthru
      _
    %v49 = vld [vmem:[#allocation2] sm:$0xff]
    %v50 = vld [vmem:[#allocation2 + $0x8] sm:$0xff]
    %v51 = vld [vmem:[#allocation2 + $0x10] sm:$0xff]
    %v52 = vld [vmem:[#allocation2 + $0x18] sm:$0xff]
    %v53 = vld [vmem:[%s1] sm:$0xf]
    %v54 = vld [vmem:[%s1 + $0x4] sm:$0xf]
    %v55 = vld [vmem:[%s1 + $0x8] sm:$0xf]
    %v56 = vld [vmem:[%s1 + $0xc] sm:$0xf]
    %v57 = vld [vmem:[%s1 + $0x10] sm:$0xf]
    %v58 = vld [vmem:[%s1 + $0x14] sm:$0xf]
    %v59 = vld [vmem:[%s1 + $0x18] sm:$0xf]
    %v60 = vld [vmem:[%s1 + $0x1c] sm:$0xf]
    %v61 = vld [vmem:[%s1 + $0x20] sm:$0xf]
    %v62 = vld [vmem:[%s1 + $0x24] sm:$0xf]
    %v63 = vld [vmem:[%s1 + $0x28] sm:$0xf]
    %v64 = vld [vmem:[%s1 + $0x2c] sm:$0xf]
    %v65 = vld [vmem:[%s1 + $0x30] sm:$0xf]
    %v66 = vld [vmem:[%s1 + $0x34] sm:$0xf]
    %v67 = vld [vmem:[%s1 + $0x38] sm:$0xf]
    %v68 = vld [vmem:[%s1 + $0x3c] sm:$0xf]
    %v69 = vld [vmem:[%s1 + $0x40] sm:$0xf]
    %v70 = vld [vmem:[%s1 + $0x44] sm:$0xf]
    %v71 = vld [vmem:[%s1 + $0x48] sm:$0xf]
    %v72 = vld [vmem:[%s1 + $0x4c] sm:$0xf]
    %v73 = vld [vmem:[%s1 + $0x50] sm:$0xf]
    %v74 = vld [vmem:[%s1 + $0x54] sm:$0xf]
    %v75 = vld [vmem:[%s1 + $0x58] sm:$0xf]
    %v76 = vld [vmem:[%s1 + $0x5c] sm:$0xf]
    %v77 = vld [vmem:[%s1 + $0x60] sm:$0xf]
    %v78 = vld [vmem:[%s1 + $0x64] sm:$0xf]
    %v79 = vld [vmem:[%s1 + $0x68] sm:$0xf]
    %v80 = vld [vmem:[%s1 + $0x6c] sm:$0xf]
    %v81 = vld [vmem:[%s1 + $0x70] sm:$0xf]
    %v82 = vld [vmem:[%s1 + $0x74] sm:$0xf]
    %v83 = vld [vmem:[%s1 + $0x78] sm:$0xf]
    %v84 = vld [vmem:[%s1 + $0x7c] sm:$0xf]
    %v85 = vld [vmem:[#allocation4] sm:$0xff]
    %v86 = vld [vmem:[#allocation4 + $0x8] sm:$0xff]
    %v87 = vld [vmem:[#allocation4 + $0x10] sm:$0xff]
    %v88 = vld [vmem:[#allocation4 + $0x18] sm:$0xff]
    %90 = vset.pattern.permute.xlu0 0
    %91 = vperm.xlu0 %90, %v85
    %v92 = vpop.permute.xlu0 %91
    %95 = vset.pattern.permute.xlu0 0
    %96 = vperm.xlu0 %95, %v86
    %v97 = vpop.permute.xlu0 %96
    %100 = vset.pattern.permute.xlu0 0
    %101 = vperm.xlu0 %100, %v87
    %v102 = vpop.permute.xlu0 %101
    %105 = vset.pattern.permute.xlu0 0
    %106 = vperm.xlu0 %105, %v88
    %v107 = vpop.permute.xlu0 %106
    %v113 = vunpack.c.l.b16 %v49
    %v114 = vunpack.c.h.b16 %v49
    %v115 = vunpack.c.l.b16 %v50
    %v116 = vunpack.c.h.b16 %v50
    %v117 = vunpack.c.l.b16 %v51
    %v118 = vunpack.c.h.b16 %v51
    %v119 = vunpack.c.l.b16 %v52
    %v120 = vunpack.c.h.b16 %v52
    %v121 = vpack.c.b16 %v115, %v113
    %v122 = vpack.c.b16 %v116, %v114
    %v123 = vpack.c.b16 %v119, %v117
    %v124 = vpack.c.b16 %v120, %v118
    %v161 = vunpack.c.l.b16 %v53
    %v162 = vunpack.c.l.b16 %v54
    %v163 = vunpack.c.l.b16 %v55
    %v164 = vunpack.c.l.b16 %v56
    %v165 = vunpack.c.l.b16 %v57
    %v166 = vunpack.c.l.b16 %v58
    %v167 = vunpack.c.l.b16 %v59
    %v168 = vunpack.c.l.b16 %v60
    %v169 = vunpack.c.l.b16 %v61
    %v170 = vunpack.c.l.b16 %v62
    %v171 = vunpack.c.l.b16 %v63
    %v172 = vunpack.c.l.b16 %v64
    %v173 = vunpack.c.l.b16 %v65
    %v174 = vunpack.c.l.b16 %v66
    %v175 = vunpack.c.l.b16 %v67
    %v176 = vunpack.c.l.b16 %v68
    %v177 = vunpack.c.l.b16 %v69
    %v178 = vunpack.c.l.b16 %v70
    %v179 = vunpack.c.l.b16 %v71
    %v180 = vunpack.c.l.b16 %v72
    %v181 = vunpack.c.l.b16 %v73
    %v182 = vunpack.c.l.b16 %v74
    %v183 = vunpack.c.l.b16 %v75
    %v184 = vunpack.c.l.b16 %v76
    %v185 = vunpack.c.l.b16 %v77
    %v186 = vunpack.c.l.b16 %v78
    %v187 = vunpack.c.l.b16 %v79
    %v188 = vunpack.c.l.b16 %v80
    %v189 = vunpack.c.l.b16 %v81
    %v190 = vunpack.c.l.b16 %v82
    %v191 = vunpack.c.l.b16 %v83
    %v192 = vunpack.c.l.b16 %v84
    %v193 = vpack.c.b16 %v162, %v161
    %v194 = vpack.c.b16 %v164, %v163
    %v195 = vpack.c.b16 %v166, %v165
    %v196 = vpack.c.b16 %v168, %v167
    %v197 = vpack.c.b16 %v170, %v169
    %v198 = vpack.c.b16 %v172, %v171
    %v199 = vpack.c.b16 %v174, %v173
    %v200 = vpack.c.b16 %v176, %v175
    %v201 = vpack.c.b16 %v178, %v177
    %v202 = vpack.c.b16 %v180, %v179
    %v203 = vpack.c.b16 %v182, %v181
    %v204 = vpack.c.b16 %v184, %v183
    %v205 = vpack.c.b16 %v186, %v185
    %v206 = vpack.c.b16 %v188, %v187
    %v207 = vpack.c.b16 %v190, %v189
    %v208 = vpack.c.b16 %v192, %v191
    %225 = vmatprep.subr.bf16.mxu0 0
    %226 = vmatpush1.bf16.msra.mxu0 %v200
    %227 = vmatprep.subr.bf16.mxu0 0
    %228 = vmatpush1.bf16.msra.mxu0 %v199
    %229 = vmatprep.subr.bf16.mxu0 0
    %230 = vmatpush1.bf16.msra.mxu0 %v198
    %231 = vmatprep.subr.bf16.mxu0 0
    %232 = vmatpush1.bf16.msra.mxu0 %v197
    %233 = vmatprep.subr.bf16.mxu0 0
    %234 = vmatpush1.bf16.msra.mxu0 %v196
    %235 = vmatprep.subr.bf16.mxu0 0
    %236 = vmatpush1.bf16.msra.mxu0 %v195
    %237 = vmatprep.subr.bf16.mxu0 0
    %238 = vmatpush1.bf16.msra.mxu0 %v194
    %239 = vmatprep.subr.bf16.mxu0 0
    %240 = vmatpush1.bf16.msra.mxu0 %v193
    %241 = vmatprep.subr.bf16.mxu0 0
    %242 = vmatpush2.bf16.msra.mxu0 %v208
    %243 = vmatprep.subr.bf16.mxu0 0
    %244 = vmatpush2.bf16.msra.mxu0 %v207
    %245 = vmatprep.subr.bf16.mxu0 0
    %246 = vmatpush2.bf16.msra.mxu0 %v206
    %247 = vmatprep.subr.bf16.mxu0 0
    %248 = vmatpush2.bf16.msra.mxu0 %v205
    %249 = vmatprep.subr.bf16.mxu0 0
    %250 = vmatpush2.bf16.msra.mxu0 %v204
    %251 = vmatprep.subr.bf16.mxu0 0
    %252 = vmatpush2.bf16.msra.mxu0 %v203
    %253 = vmatprep.subr.bf16.mxu0 0
    %254 = vmatpush2.bf16.msra.mxu0 %v202
    %255 = vmatprep.subr.bf16.mxu0 0
    %256 = vmatpush2.bf16.msra.mxu0 %v201
    %257 = vmatprep.mubr.bf16.mxu0 %v122
    %258 = vmatmul.mubr.bf16.gmra.mxu0 %v121
    %v259 = vpop.f32.mrf.mxu0
    %v260 = vadd.f32 %v92, %v259
    %v261 = vpop.f32.mrf.mxu0
    %v262 = vpop.f32.mrf.mxu0
    %v263 = vadd.f32 %v97, %v262
    %v264 = vpop.f32.mrf.mxu0
    %265 = vmatprep.mubr.bf16.mxu0 %v124
    %266 = vmatmul.mubr.bf16.gmra.mxu0 %v123
    %v267 = vpop.f32.mrf.mxu0
    %v268 = vadd.f32 %v102, %v267
    %v269 = vpop.f32.mrf.mxu0
    %v270 = vpop.f32.mrf.mxu0
    %v271 = vadd.f32 %v107, %v270
    %v272 = vpop.f32.mrf.mxu0
    %273 = vdwg.mxu0
    %vm274 = vcmask 261120
    %v275 = vsel %vm274, %v260, 0.0
    %276 = vadd.xlane.f32.xlu0 %v275
    %v277 = vpop.xlane.xlu0 %276
    %v278 = vsel %vm274, %v263, 0.0
    %279 = vadd.xlane.f32.xlu0 %v278
    %v280 = vpop.xlane.xlu0 %279
    %v281 = vsel %vm274, %v268, 0.0
    %282 = vadd.xlane.f32.xlu0 %v281
    %v283 = vpop.xlane.xlu0 %282
    %v284 = vsel %vm274, %v271, 0.0
    %285 = vadd.xlane.f32.xlu0 %v284
    %v286 = vpop.xlane.xlu0 %285
    %v287 = vmul.f32 %v277, 0.03125
    %v288 = vmul.f32 %v280, 0.03125
    %v289 = vmul.f32 %v283, 0.03125
    %v290 = vmul.f32 %v286, 0.03125
    %v291 = vsub.f32 %v260, %v287
    %v292 = vsub.f32 %v263, %v288
    %v293 = vsub.f32 %v268, %v289
    %v294 = vsub.f32 %v271, %v290
    %v295 = vmul.f32 %v291, %v291
    %v296 = vmul.f32 %v292, %v292
    %v297 = vmul.f32 %v293, %v293
    %v298 = vmul.f32 %v294, %v294
    %v299 = vsel %vm274, %v295, 0.0
    %300 = vadd.xlane.f32.xlu0 %v299
    %v301 = vpop.xlane.xlu0 %300
    %v302 = vsel %vm274, %v296, 0.0
    %303 = vadd.xlane.f32.xlu0 %v302
    %v304 = vpop.xlane.xlu0 %303
    %v305 = vsel %vm274, %v297, 0.0
    %306 = vadd.xlane.f32.xlu0 %v305
    %v307 = vpop.xlane.xlu0 %306
    %v308 = vsel %vm274, %v298, 0.0
    %309 = vadd.xlane.f32.xlu0 %v308
    %v310 = vpop.xlane.xlu0 %309
    %v311 = vmul.f32 %v301, 0.03125
    %v312 = vmul.f32 %v304, 0.03125
    %v313 = vmul.f32 %v307, 0.03125
    %v314 = vmul.f32 %v310, 0.03125
    %v315 = vld [vmem:[%s3] sm:$0xff]
    %v316 = vld [vmem:[%s3 + $0x8] sm:$0xff]
    %v317 = vld [vmem:[%s3 + $0x10] sm:$0xff]
    %v318 = vld [vmem:[%s3 + $0x18] sm:$0xff]
    %v319 = vadd.f32 %v311, 1e-05
    %v320 = vadd.f32 %v312, 1e-05
    %v321 = vadd.f32 %v313, 1e-05
    %v322 = vadd.f32 %v314, 1e-05
    %v323 = vrsqrt.pop %v319
    %v324 = vrsqrt.pop %v320
    %v325 = vrsqrt.pop %v321
    %v326 = vrsqrt.pop %v322
    %v327 = vmul.f32 %v315, %v323
    %v328 = vmul.f32 %v316, %v324
    %v329 = vmul.f32 %v317, %v325
    %v330 = vmul.f32 %v318, %v326
    %332 = vset.pattern.permute.xlu0 0
    %333 = vperm.xlu0 %332, %v327
    %v334 = vpop.permute.xlu0 %333
    %337 = vset.pattern.permute.xlu0 0
    %338 = vperm.xlu0 %337, %v328
    %v339 = vpop.permute.xlu0 %338
    %342 = vset.pattern.permute.xlu0 0
    %343 = vperm.xlu0 %342, %v329
    %v344 = vpop.permute.xlu0 %343
    %347 = vset.pattern.permute.xlu0 0
    %348 = vperm.xlu0 %347, %v330
    %v349 = vpop.permute.xlu0 %348
    %v351 = vmul.f32 %v291, %v334
    %v352 = vmul.f32 %v292, %v339
    %v353 = vmul.f32 %v293, %v344
    %v354 = vmul.f32 %v294, %v349
    %v355 = vld [vmem:[%s4] sm:$0xff]
    %v356 = vld [vmem:[%s4 + $0x8] sm:$0xff]
    %v357 = vld [vmem:[%s4 + $0x10] sm:$0xff]
    %v358 = vld [vmem:[%s4 + $0x18] sm:$0xff]
    %360 = vset.pattern.permute.xlu0 0
    %361 = vperm.xlu0 %360, %v355
    %v362 = vpop.permute.xlu0 %361
    %365 = vset.pattern.permute.xlu0 0
    %366 = vperm.xlu0 %365, %v356
    %v367 = vpop.permute.xlu0 %366
    %370 = vset.pattern.permute.xlu0 0
    %371 = vperm.xlu0 %370, %v357
    %v372 = vpop.permute.xlu0 %371
    %375 = vset.pattern.permute.xlu0 0
    %376 = vperm.xlu0 %375, %v358
    %v377 = vpop.permute.xlu0 %376
    %v379 = vadd.f32 %v351, %v362
    %v380 = vadd.f32 %v352, %v367
    %v381 = vadd.f32 %v353, %v372
    %v382 = vadd.f32 %v354, %v377
    %v383 = vmax.f32 %v379, 0.0
    %v384 = vmax.f32 %v380, 0.0
    %v385 = vmax.f32 %v381, 0.0
    %v386 = vmax.f32 %v382, 0.0
    %387 = vst.msk [vmem:[%s5] sm:$0xff] %vm274, %v383
    %388 = vst.msk [vmem:[%s5 + $0x8] sm:$0xff] %vm274, %v384
    %389 = vst.msk [vmem:[%s5 + $0x10] sm:$0xff] %vm274, %v385
    %390 = vst.msk [vmem:[%s5 + $0x18] sm:$0xff] %vm274, %v386
    // Predicated region
    $region30: #{generator_forward.4} parent=1 // pred_check
      _
    $region31: #{generator_forward.4} parent=1 // pred_check_branch
      %392 = sbr.rel (0) target = $region33
    $region32: #{generator_forward.4} parent=1 // pred_region
      _
    $region33: #{generator_forward.4} parent=1 // pred_fallthru
      _
    // Predicated region
    $region34: #{generator_forward.4} parent=1 // pred_check
      _
    $region35: #{generator_forward.4} parent=1 // pred_check_branch
      %394 = sbr.rel (0) target = $region37
    $region36: #{generator_forward.4} parent=1 // pred_region
      _
    $region37: #{generator_forward.4} parent=1 // pred_fallthru
      _
    %395 = vsyncpa [#allocation3], 1
    %396 = vsyncpa [#allocation5], 1

// kernel: generator_forward.5
$region0: #{generator_forward.5}
  #allocation0 [shape = 'u32[]', space=smem, size = 0x4, offset = 0x4, fixed_abs, tag = 'smem constant byte address 0x4 - core index']
  #allocation1 [shape = 'u32[144,128]{1,0:T(1,128)}', space=vmem, size = 0x12000, scoped, tag = 'internal scratch']
  %s0 = inlined_call_operand.vmem [shape: bf16[16,512], index: 0, kind: input, shape index: {}]
  %s1 = inlined_call_operand.vmem [shape: bf16[512,128], index: 1, kind: input, shape index: {}]
  %s2 = inlined_call_operand.vmem [shape: f32[16,1], index: 2, kind: input, shape index: {}, may-alias: {2,4}]
  %s3 = inlined_call_operand.vmem [shape: f32[16,1], index: 3, kind: input, shape index: {}]
  %s4 = inlined_call_operand.vmem [shape: f32[16,1], index: 4, kind: input, shape index: {}, may-alias: {2,4}]
  %s5 = inlined_call_operand.vmem [shape: f32[16,128], index: 5, kind: output, shape index: {}]
  %s6 = sld [smem:[#allocation0]]
  $region30: #{generator_forward.5} parent=0
    _
  %s8 = ssub.s32 1, %s6
  %s9 = scalar_select 0, %s8, %s6
  // Predicated region
  $region2: #{generator_forward.5} parent=0 // pred_check
    _
  $region3: #{generator_forward.5} parent=0 // pred_check_branch
    %11 = sbr.rel (0) target = $region5
  $region4: #{generator_forward.5} parent=0 // pred_region
    _
  $region5: #{generator_forward.5} parent=0 // pred_fallthru
    _
  // Predicated region
  $region6: #{generator_forward.5} parent=0 // pred_check
    _
  $region7: #{generator_forward.5} parent=0 // pred_check_branch
    %13 = sbr.rel (0) target = $region9
  $region8: #{generator_forward.5} parent=0 // pred_region
    _
  $region9: #{generator_forward.5} parent=0 // pred_fallthru
    _
  // Predicated region
  $region10: #{generator_forward.5} parent=0 // pred_check
    _
  $region11: #{generator_forward.5} parent=0 // pred_check_branch
    %15 = sbr.rel (0) target = $region13
  $region12: #{generator_forward.5} parent=0 // pred_region
    _
  $region13: #{generator_forward.5} parent=0 // pred_fallthru
    _
  // Predicated region
  $region14: #{generator_forward.5} parent=0 // pred_check
    _
  $region15: #{generator_forward.5} parent=0 // pred_check_branch
    %17 = sbr.rel (0) target = $region17
  $region16: #{generator_forward.5} parent=0 // pred_region
    _
  $region17: #{generator_forward.5} parent=0 // pred_fallthru
    _
  // Predicated region
  $region18: #{generator_forward.5} parent=0 // pred_check
    _
  $region19: #{generator_forward.5} parent=0 // pred_check_branch
    %19 = sbr.rel (0) target = $region21
  $region20: #{generator_forward.5} parent=0 // pred_region
    _
  $region21: #{generator_forward.5} parent=0 // pred_fallthru
    _
  %v21 = vld [vmem:[%s0] sm:$0xff]
  %v22 = vld [vmem:[%s0 + $0x8] sm:$0xff]
  %v23 = vld [vmem:[%s0 + $0x10] sm:$0xff]
  %v24 = vld [vmem:[%s0 + $0x18] sm:$0xff]
  %v25 = vld [vmem:[%s1] sm:$0xf]
  %v26 = vld [vmem:[%s1 + $0x4] sm:$0xf]
  %v27 = vld [vmem:[%s1 + $0x8] sm:$0xf]
  %v28 = vld [vmem:[%s1 + $0xc] sm:$0xf]
  %v29 = vld [vmem:[%s1 + $0x10] sm:$0xf]
  %v30 = vld [vmem:[%s1 + $0x14] sm:$0xf]
  %v31 = vld [vmem:[%s1 + $0x18] sm:$0xf]
  %v32 = vld [vmem:[%s1 + $0x1c] sm:$0xf]
  %v33 = vld [vmem:[%s1 + $0x20] sm:$0xf]
  %v34 = vld [vmem:[%s1 + $0x24] sm:$0xf]
  %v35 = vld [vmem:[%s1 + $0x28] sm:$0xf]
  %v36 = vld [vmem:[%s1 + $0x2c] sm:$0xf]
  %v37 = vld [vmem:[%s1 + $0x30] sm:$0xf]
  %v38 = vld [vmem:[%s1 + $0x34] sm:$0xf]
  %v39 = vld [vmem:[%s1 + $0x38] sm:$0xf]
  %v40 = vld [vmem:[%s1 + $0x3c] sm:$0xf]
  %v41 = vld [vmem:[%s1 + $0x40] sm:$0xf]
  %v42 = vld [vmem:[%s1 + $0x44] sm:$0xf]
  %v43 = vld [vmem:[%s1 + $0x48] sm:$0xf]
  %v44 = vld [vmem:[%s1 + $0x4c] sm:$0xf]
  %v45 = vld [vmem:[%s1 + $0x50] sm:$0xf]
  %v46 = vld [vmem:[%s1 + $0x54] sm:$0xf]
  %v47 = vld [vmem:[%s1 + $0x58] sm:$0xf]
  %v48 = vld [vmem:[%s1 + $0x5c] sm:$0xf]
  %v49 = vld [vmem:[%s1 + $0x60] sm:$0xf]
  %v50 = vld [vmem:[%s1 + $0x64] sm:$0xf]
  %v51 = vld [vmem:[%s1 + $0x68] sm:$0xf]
  %v52 = vld [vmem:[%s1 + $0x6c] sm:$0xf]
  %v53 = vld [vmem:[%s1 + $0x70] sm:$0xf]
  %v54 = vld [vmem:[%s1 + $0x74] sm:$0xf]
  %v55 = vld [vmem:[%s1 + $0x78] sm:$0xf]
  %v56 = vld [vmem:[%s1 + $0x7c] sm:$0xf]
  %v57 = vld [vmem:[%s1 + $0x80] sm:$0xf]
  %v58 = vld [vmem:[%s1 + $0x84] sm:$0xf]
  %v59 = vld [vmem:[%s1 + $0x88] sm:$0xf]
  %v60 = vld [vmem:[%s1 + $0x8c] sm:$0xf]
  %v61 = vld [vmem:[%s1 + $0x90] sm:$0xf]
  %v62 = vld [vmem:[%s1 + $0x94] sm:$0xf]
  %v63 = vld [vmem:[%s1 + $0x98] sm:$0xf]
  %v64 = vld [vmem:[%s1 + $0x9c] sm:$0xf]
  %v65 = vld [vmem:[%s1 + $0xa0] sm:$0xf]
  %v66 = vld [vmem:[%s1 + $0xa4] sm:$0xf]
  %v67 = vld [vmem:[%s1 + $0xa8] sm:$0xf]
  %v68 = vld [vmem:[%s1 + $0xac] sm:$0xf]
  %v69 = vld [vmem:[%s1 + $0xb0] sm:$0xf]
  %v70 = vld [vmem:[%s1 + $0xb4] sm:$0xf]
  %v71 = vld [vmem:[%s1 + $0xb8] sm:$0xf]
  %v72 = vld [vmem:[%s1 + $0xbc] sm:$0xf]
  %v73 = vld [vmem:[%s1 + $0xc0] sm:$0xf]
  %v74 = vld [vmem:[%s1 + $0xc4] sm:$0xf]
  %v75 = vld [vmem:[%s1 + $0xc8] sm:$0xf]
  %v76 = vld [vmem:[%s1 + $0xcc] sm:$0xf]
  %v77 = vld [vmem:[%s1 + $0xd0] sm:$0xf]
  %v78 = vld [vmem:[%s1 + $0xd4] sm:$0xf]
  %v79 = vld [vmem:[%s1 + $0xd8] sm:$0xf]
  %v80 = vld [vmem:[%s1 + $0xdc] sm:$0xf]
  %v81 = vld [vmem:[%s1 + $0xe0] sm:$0xf]
  %v82 = vld [vmem:[%s1 + $0xe4] sm:$0xf]
  %v83 = vld [vmem:[%s1 + $0xe8] sm:$0xf]
  %v84 = vld [vmem:[%s1 + $0xec] sm:$0xf]
  %v85 = vld [vmem:[%s1 + $0xf0] sm:$0xf]
  %v86 = vld [vmem:[%s1 + $0xf4] sm:$0xf]
  %v87 = vld [vmem:[%s1 + $0xf8] sm:$0xf]
  %v88 = vld [vmem:[%s1 + $0xfc] sm:$0xf]
  %v89 = vld [vmem:[%s2] sm:$0xff]
  %v90 = vld [vmem:[%s2 + $0x8] sm:$0xff]
  %92 = vset.pattern.permute.xlu0 0
  %93 = vperm.xlu0 %92, %v89
  %v94 = vpop.permute.xlu0 %93
  %97 = vset.pattern.permute.xlu0 0
  %98 = vperm.xlu0 %97, %v90
  %v99 = vpop.permute.xlu0 %98
  %v105 = vunpack.c.l.b16 %v21
  %v106 = vunpack.c.h.b16 %v21
  %v107 = vunpack.c.l.b16 %v22
  %v108 = vunpack.c.h.b16 %v22
  %v109 = vunpack.c.l.b16 %v23
  %v110 = vunpack.c.h.b16 %v23
  %v111 = vunpack.c.l.b16 %v24
  %v112 = vunpack.c.h.b16 %v24
  %v113 = vpack.c.b16 %v109, %v105
  %v114 = vpack.c.b16 %v110, %v106
  %v115 = vpack.c.b16 %v111, %v107
  %v116 = vpack.c.b16 %v112, %v108
  %v185 = vunpack.c.l.b16 %v25
  %v186 = vunpack.c.l.b16 %v26
  %v187 = vunpack.c.l.b16 %v27
  %v188 = vunpack.c.l.b16 %v28
  %v189 = vunpack.c.l.b16 %v29
  %v190 = vunpack.c.l.b16 %v30
  %v191 = vunpack.c.l.b16 %v31
  %v192 = vunpack.c.l.b16 %v32
  %v193 = vunpack.c.l.b16 %v33
  %v194 = vunpack.c.l.b16 %v34
  %v195 = vunpack.c.l.b16 %v35
  %v196 = vunpack.c.l.b16 %v36
  %v197 = vunpack.c.l.b16 %v37
  %v198 = vunpack.c.l.b16 %v38
  %v199 = vunpack.c.l.b16 %v39
  %v200 = vunpack.c.l.b16 %v40
  %v201 = vunpack.c.l.b16 %v41
  %v202 = vunpack.c.l.b16 %v42
  %v203 = vunpack.c.l.b16 %v43
  %v204 = vunpack.c.l.b16 %v44
  %v205 = vunpack.c.l.b16 %v45
  %v206 = vunpack.c.l.b16 %v46
  %v207 = vunpack.c.l.b16 %v47
  %v208 = vunpack.c.l.b16 %v48
  %v209 = vunpack.c.l.b16 %v49
  %v210 = vunpack.c.l.b16 %v50
  %v211 = vunpack.c.l.b16 %v51
  %v212 = vunpack.c.l.b16 %v52
  %v213 = vunpack.c.l.b16 %v53
  %v214 = vunpack.c.l.b16 %v54
  %v215 = vunpack.c.l.b16 %v55
  %v216 = vunpack.c.l.b16 %v56
  %v217 = vunpack.c.l.b16 %v57
  %v218 = vunpack.c.l.b16 %v58
  %v219 = vunpack.c.l.b16 %v59
  %v220 = vunpack.c.l.b16 %v60
  %v221 = vunpack.c.l.b16 %v61
  %v222 = vunpack.c.l.b16 %v62
  %v223 = vunpack.c.l.b16 %v63
  %v224 = vunpack.c.l.b16 %v64
  %v225 = vunpack.c.l.b16 %v65
  %v226 = vunpack.c.l.b16 %v66
  %v227 = vunpack.c.l.b16 %v67
  %v228 = vunpack.c.l.b16 %v68
  %v229 = vunpack.c.l.b16 %v69
  %v230 = vunpack.c.l.b16 %v70
  %v231 = vunpack.c.l.b16 %v71
  %v232 = vunpack.c.l.b16 %v72
  %v233 = vunpack.c.l.b16 %v73
  %v234 = vunpack.c.l.b16 %v74
  %v235 = vunpack.c.l.b16 %v75
  %v236 = vunpack.c.l.b16 %v76
  %v237 = vunpack.c.l.b16 %v77
  %v238 = vunpack.c.l.b16 %v78
  %v239 = vunpack.c.l.b16 %v79
  %v240 = vunpack.c.l.b16 %v80
  %v241 = vunpack.c.l.b16 %v81
  %v242 = vunpack.c.l.b16 %v82
  %v243 = vunpack.c.l.b16 %v83
  %v244 = vunpack.c.l.b16 %v84
  %v245 = vunpack.c.l.b16 %v85
  %v246 = vunpack.c.l.b16 %v86
  %v247 = vunpack.c.l.b16 %v87
  %v248 = vunpack.c.l.b16 %v88
  %v249 = vpack.c.b16 %v186, %v185
  %v250 = vpack.c.b16 %v188, %v187
  %v251 = vpack.c.b16 %v190, %v189
  %v252 = vpack.c.b16 %v192, %v191
  %v253 = vpack.c.b16 %v194, %v193
  %v254 = vpack.c.b16 %v196, %v195
  %v255 = vpack.c.b16 %v198, %v197
  %v256 = vpack.c.b16 %v200, %v199
  %v257 = vpack.c.b16 %v202, %v201
  %v258 = vpack.c.b16 %v204, %v203
  %v259 = vpack.c.b16 %v206, %v205
  %v260 = vpack.c.b16 %v208, %v207
  %v261 = vpack.c.b16 %v210, %v209
  %v262 = vpack.c.b16 %v212, %v211
  %v263 = vpack.c.b16 %v214, %v213
  %v264 = vpack.c.b16 %v216, %v215
  %v265 = vpack.c.b16 %v218, %v217
  %v266 = vpack.c.b16 %v220, %v219
  %v267 = vpack.c.b16 %v222, %v221
  %v268 = vpack.c.b16 %v224, %v223
  %v269 = vpack.c.b16 %v226, %v225
  %v270 = vpack.c.b16 %v228, %v227
  %v271 = vpack.c.b16 %v230, %v229
  %v272 = vpack.c.b16 %v232, %v231
  %v273 = vpack.c.b16 %v234, %v233
  %v274 = vpack.c.b16 %v236, %v235
  %v275 = vpack.c.b16 %v238, %v237
  %v276 = vpack.c.b16 %v240, %v239
  %v277 = vpack.c.b16 %v242, %v241
  %v278 = vpack.c.b16 %v244, %v243
  %v279 = vpack.c.b16 %v246, %v245
  %v280 = vpack.c.b16 %v248, %v247
  %313 = vmatprep.subr.bf16.mxu0 0
  %314 = vmatpush1.bf16.msra.mxu0 %v256
  %315 = vmatprep.subr.bf16.mxu0 0
  %316 = vmatpush1.bf16.msra.mxu0 %v255
  %317 = vmatprep.subr.bf16.mxu0 0
  %318 = vmatpush1.bf16.msra.mxu0 %v254
  %319 = vmatprep.subr.bf16.mxu0 0
  %320 = vmatpush1.bf16.msra.mxu0 %v253
  %321 = vmatprep.subr.bf16.mxu0 0
  %322 = vmatpush1.bf16.msra.mxu0 %v252
  %323 = vmatprep.subr.bf16.mxu0 0
  %324 = vmatpush1.bf16.msra.mxu0 %v251
  %325 = vmatprep.subr.bf16.mxu0 0
  %326 = vmatpush1.bf16.msra.mxu0 %v250
  %327 = vmatprep.subr.bf16.mxu0 0
  %328 = vmatpush1.bf16.msra.mxu0 %v249
  %329 = vmatprep.subr.bf16.mxu0 0
  %330 = vmatpush2.bf16.msra.mxu0 %v264
  %331 = vmatprep.subr.bf16.mxu0 0
  %332 = vmatpush2.bf16.msra.mxu0 %v263
  %333 = vmatprep.subr.bf16.mxu0 0
  %334 = vmatpush2.bf16.msra.mxu0 %v262
  %335 = vmatprep.subr.bf16.mxu0 0
  %336 = vmatpush2.bf16.msra.mxu0 %v261
  %337 = vmatprep.subr.bf16.mxu0 0
  %338 = vmatpush2.bf16.msra.mxu0 %v260
  %339 = vmatprep.subr.bf16.mxu0 0
  %340 = vmatpush2.bf16.msra.mxu0 %v259
  %341 = vmatprep.subr.bf16.mxu0 0
  %342 = vmatpush2.bf16.msra.mxu0 %v258
  %343 = vmatprep.subr.bf16.mxu0 0
  %344 = vmatpush2.bf16.msra.mxu0 %v257
  %345 = vmatprep.mubr.bf16.mxu0 %v114
  %346 = vmatmul.mubr.bf16.gmra.mxu0 %v113
  %v347 = vpop.f32.mrf.mxu0
  %v348 = vadd.f32 %v94, %v347
  %v349 = vpop.f32.mrf.mxu0
  %v350 = vpop.f32.mrf.mxu0
  %v351 = vadd.f32 %v99, %v350
  %v352 = vpop.f32.mrf.mxu0
  %353 = vdwg.mxu0
  %354 = vmatprep.subr.bf16.mxu0 0
  %355 = vmatpush1.bf16.msra.mxu0 %v272
  %356 = vmatprep.subr.bf16.mxu0 0
  %357 = vmatpush1.bf16.msra.mxu0 %v271
  %358 = vmatprep.subr.bf16.mxu0 0
  %359 = vmatpush1.bf16.msra.mxu0 %v270
  %360 = vmatprep.subr.bf16.mxu0 0
  %361 = vmatpush1.bf16.msra.mxu0 %v269
  %362 = vmatprep.subr.bf16.mxu0 0
  %363 = vmatpush1.bf16.msra.mxu0 %v268
  %364 = vmatprep.subr.bf16.mxu0 0
  %365 = vmatpush1.bf16.msra.mxu0 %v267
  %366 = vmatprep.subr.bf16.mxu0 0
  %367 = vmatpush1.bf16.msra.mxu0 %v266
  %368 = vmatprep.subr.bf16.mxu0 0
  %369 = vmatpush1.bf16.msra.mxu0 %v265
  %370 = vmatprep.subr.bf16.mxu0 0
  %371 = vmatpush2.bf16.msra.mxu0 %v280
  %372 = vmatprep.subr.bf16.mxu0 0
  %373 = vmatpush2.bf16.msra.mxu0 %v279
  %374 = vmatprep.subr.bf16.mxu0 0
  %375 = vmatpush2.bf16.msra.mxu0 %v278
  %376 = vmatprep.subr.bf16.mxu0 0
  %377 = vmatpush2.bf16.msra.mxu0 %v277
  %378 = vmatprep.subr.bf16.mxu0 0
  %379 = vmatpush2.bf16.msra.mxu0 %v276
  %380 = vmatprep.subr.bf16.mxu0 0
  %381 = vmatpush2.bf16.msra.mxu0 %v275
  %382 = vmatprep.subr.bf16.mxu0 0
  %383 = vmatpush2.bf16.msra.mxu0 %v274
  %384 = vmatprep.subr.bf16.mxu0 0
  %385 = vmatpush2.bf16.msra.mxu0 %v273
  %386 = vmatprep.mubr.bf16.mxu0 %v116
  %387 = vmatmul.mubr.bf16.gmra.mxu0 %v115
  %v388 = vpop.f32.mrf.mxu0
  %v389 = vadd.f32 %v348, %v388
  %v390 = vpop.f32.mrf.mxu0
  %v391 = vpop.f32.mrf.mxu0
  %v392 = vadd.f32 %v351, %v391
  %v393 = vpop.f32.mrf.mxu0
  %394 = vdwg.mxu0
  %395 = vadd.xlane.f32.xlu0 %v389
  %v396 = vpop.xlane.xlu0 %395
  %397 = vadd.xlane.f32.xlu0 %v392
  %v398 = vpop.xlane.xlu0 %397
  %v399 = vmul.f32 %v396, 0.0078125
  %v400 = vmul.f32 %v398, 0.0078125
  %v401 = vsub.f32 %v389, %v399
  %v402 = vsub.f32 %v392, %v400
  %v403 = vmul.f32 %v401, %v401
  %v404 = vmul.f32 %v402, %v402
  %405 = vadd.xlane.f32.xlu0 %v403
  %v406 = vpop.xlane.xlu0 %405
  %407 = vadd.xlane.f32.xlu0 %v404
  %v408 = vpop.xlane.xlu0 %407
  %v409 = vmul.f32 %v406, 0.0078125
  %v410 = vmul.f32 %v408, 0.0078125
  %v411 = vld [vmem:[%s3] sm:$0xff]
  %v412 = vld [vmem:[%s3 + $0x8] sm:$0xff]
  %v413 = vadd.f32 %v409, 1e-05
  %v414 = vadd.f32 %v410, 1e-05
  %v415 = vrsqrt.pop %v413
  %v416 = vrsqrt.pop %v414
  %v417 = vmul.f32 %v411, %v415
  %v418 = vmul.f32 %v412, %v416
  %420 = vset.pattern.permute.xlu0 0
  %421 = vperm.xlu0 %420, %v417
  %v422 = vpop.permute.xlu0 %421
  %425 = vset.pattern.permute.xlu0 0
  %426 = vperm.xlu0 %425, %v418
  %v427 = vpop.permute.xlu0 %426
  %v429 = vmul.f32 %v401, %v422
  %v430 = vmul.f32 %v402, %v427
  %v431 = vld [vmem:[%s4] sm:$0xff]
  %v432 = vld [vmem:[%s4 + $0x8] sm:$0xff]
  %434 = vset.pattern.permute.xlu0 0
  %435 = vperm.xlu0 %434, %v431
  %v436 = vpop.permute.xlu0 %435
  %439 = vset.pattern.permute.xlu0 0
  %440 = vperm.xlu0 %439, %v432
  %v441 = vpop.permute.xlu0 %440
  %v443 = vadd.f32 %v429, %v436
  %v444 = vadd.f32 %v430, %v441
  %v445 = vmax.f32 %v443, 0.0
  %v446 = vmax.f32 %v444, 0.0
  %447 = vst [vmem:[%s5] sm:$0xff] %v445
  %448 = vst [vmem:[%s5 + $0x8] sm:$0xff] %v446
  // Predicated region
  $region22: #{generator_forward.5} parent=0 // pred_check
    _
  $region23: #{generator_forward.5} parent=0 // pred_check_branch
    %450 = sbr.rel (0) target = $region25
  $region24: #{generator_forward.5} parent=0 // pred_region
    _
  $region25: #{generator_forward.5} parent=0 // pred_fallthru
    _
  // Predicated region
  $region26: #{generator_forward.5} parent=0 // pred_check
    _
  $region27: #{generator_forward.5} parent=0 // pred_check_branch
    %452 = sbr.rel (0) target = $region29
  $region28: #{generator_forward.5} parent=0 // pred_region
    _
  $region29: #{generator_forward.5} parent=0 // pred_fallthru
    _

// kernel: generator_forward.6
$region0: #{generator_forward.6}
  #allocation0 [shape = 'u32[]', space=smem, size = 0x4, offset = 0x4, fixed_abs, tag = 'smem constant byte address 0x4 - core index']
  #allocation1 [shape = 'u32[144,128]{1,0:T(1,128)}', space=vmem, size = 0x12000, scoped, tag = 'internal scratch']
  %s0 = inlined_call_operand.vmem [shape: bf16[8,256], index: 0, kind: input, shape index: {}]
  %s1 = inlined_call_operand.vmem [shape: bf16[256,512], index: 1, kind: input, shape index: {}]
  %s2 = inlined_call_operand.vmem [shape: f32[8,1], index: 2, kind: input, shape index: {}, may-alias: {2,4}]
  %s3 = inlined_call_operand.vmem [shape: f32[8,1], index: 3, kind: input, shape index: {}]
  %s4 = inlined_call_operand.vmem [shape: f32[8,1], index: 4, kind: input, shape index: {}, may-alias: {2,4}]
  %s5 = inlined_call_operand.vmem [shape: f32[8,512], index: 5, kind: output, shape index: {}]
  %s6 = sld [smem:[#allocation0]]
  $region30: #{generator_forward.6} parent=0
    _
  %s8 = ssub.s32 1, %s6
  %s9 = scalar_select 0, %s8, %s6
  // Predicated region
  $region2: #{generator_forward.6} parent=0 // pred_check
    _
  $region3: #{generator_forward.6} parent=0 // pred_check_branch
    %11 = sbr.rel (0) target = $region5
  $region4: #{generator_forward.6} parent=0 // pred_region
    _
  $region5: #{generator_forward.6} parent=0 // pred_fallthru
    _
  // Predicated region
  $region6: #{generator_forward.6} parent=0 // pred_check
    _
  $region7: #{generator_forward.6} parent=0 // pred_check_branch
    %13 = sbr.rel (0) target = $region9
  $region8: #{generator_forward.6} parent=0 // pred_region
    _
  $region9: #{generator_forward.6} parent=0 // pred_fallthru
    _
  // Predicated region
  $region10: #{generator_forward.6} parent=0 // pred_check
    _
  $region11: #{generator_forward.6} parent=0 // pred_check_branch
    %15 = sbr.rel (0) target = $region13
  $region12: #{generator_forward.6} parent=0 // pred_region
    _
  $region13: #{generator_forward.6} parent=0 // pred_fallthru
    _
  // Predicated region
  $region14: #{generator_forward.6} parent=0 // pred_check
    _
  $region15: #{generator_forward.6} parent=0 // pred_check_branch
    %17 = sbr.rel (0) target = $region17
  $region16: #{generator_forward.6} parent=0 // pred_region
    _
  $region17: #{generator_forward.6} parent=0 // pred_fallthru
    _
  // Predicated region
  $region18: #{generator_forward.6} parent=0 // pred_check
    _
  $region19: #{generator_forward.6} parent=0 // pred_check_branch
    %19 = sbr.rel (0) target = $region21
  $region20: #{generator_forward.6} parent=0 // pred_region
    _
  $region21: #{generator_forward.6} parent=0 // pred_fallthru
    _
  %v20 = vld [vmem:[%s0] sm:$0xff]
  %v21 = vld [vmem:[%s1] sm:$0xff]
  %v22 = vld [vmem:[%s1 + $0x8] sm:$0xff]
  %v23 = vld [vmem:[%s1 + $0x10] sm:$0xff]
  %v24 = vld [vmem:[%s1 + $0x18] sm:$0xff]
  %v25 = vld [vmem:[%s1 + $0x20] sm:$0xff]
  %v26 = vld [vmem:[%s1 + $0x28] sm:$0xff]
  %v27 = vld [vmem:[%s1 + $0x30] sm:$0xff]
  %v28 = vld [vmem:[%s1 + $0x38] sm:$0xff]
  %v29 = vld [vmem:[%s1 + $0x40] sm:$0xff]
  %v30 = vld [vmem:[%s1 + $0x48] sm:$0xff]
  %v31 = vld [vmem:[%s1 + $0x50] sm:$0xff]
  %v32 = vld [vmem:[%s1 + $0x58] sm:$0xff]
  %v33 = vld [vmem:[%s1 + $0x60] sm:$0xff]
  %v34 = vld [vmem:[%s1 + $0x68] sm:$0xff]
  %v35 = vld [vmem:[%s1 + $0x70] sm:$0xff]
  %v36 = vld [vmem:[%s1 + $0x78] sm:$0xff]
  %v37 = vld [vmem:[%s1 + $0x80] sm:$0xff]
  %v38 = vld [vmem:[%s1 + $0x88] sm:$0xff]
  %v39 = vld [vmem:[%s1 + $0x90] sm:$0xff]
  %v40 = vld [vmem:[%s1 + $0x98] sm:$0xff]
  %v41 = vld [vmem:[%s1 + $0xa0] sm:$0xff]
  %v42 = vld [vmem:[%s1 + $0xa8] sm:$0xff]
  %v43 = vld [vmem:[%s1 + $0xb0] sm:$0xff]
  %v44 = vld [vmem:[%s1 + $0xb8] sm:$0xff]
  %v45 = vld [vmem:[%s1 + $0xc0] sm:$0xff]
  %v46 = vld [vmem:[%s1 + $0xc8] sm:$0xff]
  %v47 = vld [vmem:[%s1 + $0xd0] sm:$0xff]
  %v48 = vld [vmem:[%s1 + $0xd8] sm:$0xff]
  %v49 = vld [vmem:[%s1 + $0xe0] sm:$0xff]
  %v50 = vld [vmem:[%s1 + $0xe8] sm:$0xff]
  %v51 = vld [vmem:[%s1 + $0xf0] sm:$0xff]
  %v52 = vld [vmem:[%s1 + $0xf8] sm:$0xff]
  %v53 = vld [vmem:[%s1 + $0x100] sm:$0xff]
  %v54 = vld [vmem:[%s1 + $0x108] sm:$0xff]
  %v55 = vld [vmem:[%s1 + $0x110] sm:$0xff]
  %v56 = vld [vmem:[%s1 + $0x118] sm:$0xff]
  %v57 = vld [vmem:[%s1 + $0x120] sm:$0xff]
  %v58 = vld [vmem:[%s1 + $0x128] sm:$0xff]
  %v59 = vld [vmem:[%s1 + $0x130] sm:$0xff]
  %v60 = vld [vmem:[%s1 + $0x138] sm:$0xff]
  %v61 = vld [vmem:[%s1 + $0x140] sm:$0xff]
  %v62 = vld [vmem:[%s1 + $0x148] sm:$0xff]
  %v63 = vld [vmem:[%s1 + $0x150] sm:$0xff]
  %v64 = vld [vmem:[%s1 + $0x158] sm:$0xff]
  %v65 = vld [vmem:[%s1 + $0x160] sm:$0xff]
  %v66 = vld [vmem:[%s1 + $0x168] sm:$0xff]
  %v67 = vld [vmem:[%s1 + $0x170] sm:$0xff]
  %v68 = vld [vmem:[%s1 + $0x178] sm:$0xff]
  %v69 = vld [vmem:[%s1 + $0x180] sm:$0xff]
  %v70 = vld [vmem:[%s1 + $0x188] sm:$0xff]
  %v71 = vld [vmem:[%s1 + $0x190] sm:$0xff]
  %v72 = vld [vmem:[%s1 + $0x198] sm:$0xff]
  %v73 = vld [vmem:[%s1 + $0x1a0] sm:$0xff]
  %v74 = vld [vmem:[%s1 + $0x1a8] sm:$0xff]
  %v75 = vld [vmem:[%s1 + $0x1b0] sm:$0xff]
  %v76 = vld [vmem:[%s1 + $0x1b8] sm:$0xff]
  %v77 = vld [vmem:[%s1 + $0x1c0] sm:$0xff]
  %v78 = vld [vmem:[%s1 + $0x1c8] sm:$0xff]
  %v79 = vld [vmem:[%s1 + $0x1d0] sm:$0xff]
  %v80 = vld [vmem:[%s1 + $0x1d8] sm:$0xff]
  %v81 = vld [vmem:[%s1 + $0x1e0] sm:$0xff]
  %v82 = vld [vmem:[%s1 + $0x1e8] sm:$0xff]
  %v83 = vld [vmem:[%s1 + $0x1f0] sm:$0xff]
  %v84 = vld [vmem:[%s1 + $0x1f8] sm:$0xff]
  %v85 = vld [vmem:[%s2] sm:$0xff]
  %87 = vset.pattern.permute.xlu0 0
  %88 = vperm.xlu0 %87, %v85
  %v89 = vpop.permute.xlu0 %88
  %v92 = vunpack.c.l.b16 %v20
  %v93 = vunpack.c.h.b16 %v20
  %v94 = vpack.c.b16 %v92, %v92
  %v95 = vpack.c.b16 %v93, %v93
  %v162 = vunpack.c.l.b16 %v21
  %v163 = vunpack.c.h.b16 %v21
  %v164 = vunpack.c.l.b16 %v22
  %v165 = vunpack.c.h.b16 %v22
  %v166 = vunpack.c.l.b16 %v23
  %v167 = vunpack.c.h.b16 %v23
  %v168 = vunpack.c.l.b16 %v24
  %v169 = vunpack.c.h.b16 %v24
  %v170 = vunpack.c.l.b16 %v25
  %v171 = vunpack.c.h.b16 %v25
  %v172 = vunpack.c.l.b16 %v26
  %v173 = vunpack.c.h.b16 %v26
  %v174 = vunpack.c.l.b16 %v27
  %v175 = vunpack.c.h.b16 %v27
  %v176 = vunpack.c.l.b16 %v28
  %v177 = vunpack.c.h.b16 %v28
  %v178 = vunpack.c.l.b16 %v29
  %v179 = vunpack.c.h.b16 %v29
  %v180 = vunpack.c.l.b16 %v30
  %v181 = vunpack.c.h.b16 %v30
  %v182 = vunpack.c.l.b16 %v31
  %v183 = vunpack.c.h.b16 %v31
  %v184 = vunpack.c.l.b16 %v32
  %v185 = vunpack.c.h.b16 %v32
  %v186 = vunpack.c.l.b16 %v33
  %v187 = vunpack.c.h.b16 %v33
  %v188 = vunpack.c.l.b16 %v34
  %v189 = vunpack.c.h.b16 %v34
  %v190 = vunpack.c.l.b16 %v35
  %v191 = vunpack.c.h.b16 %v35
  %v192 = vunpack.c.l.b16 %v36
  %v193 = vunpack.c.h.b16 %v36
  %v194 = vunpack.c.l.b16 %v37
  %v195 = vunpack.c.h.b16 %v37
  %v196 = vunpack.c.l.b16 %v38
  %v197 = vunpack.c.h.b16 %v38
  %v198 = vunpack.c.l.b16 %v39
  %v199 = vunpack.c.h.b16 %v39
  %v200 = vunpack.c.l.b16 %v40
  %v201 = vunpack.c.h.b16 %v40
  %v202 = vunpack.c.l.b16 %v41
  %v203 = vunpack.c.h.b16 %v41
  %v204 = vunpack.c.l.b16 %v42
  %v205 = vunpack.c.h.b16 %v42
  %v206 = vunpack.c.l.b16 %v43
  %v207 = vunpack.c.h.b16 %v43
  %v208 = vunpack.c.l.b16 %v44
  %v209 = vunpack.c.h.b16 %v44
  %v210 = vunpack.c.l.b16 %v45
  %v211 = vunpack.c.h.b16 %v45
  %v212 = vunpack.c.l.b16 %v46
  %v213 = vunpack.c.h.b16 %v46
  %v214 = vunpack.c.l.b16 %v47
  %v215 = vunpack.c.h.b16 %v47
  %v216 = vunpack.c.l.b16 %v48
  %v217 = vunpack.c.h.b16 %v48
  %v218 = vunpack.c.l.b16 %v49
  %v219 = vunpack.c.h.b16 %v49
  %v220 = vunpack.c.l.b16 %v50
  %v221 = vunpack.c.h.b16 %v50
  %v222 = vunpack.c.l.b16 %v51
  %v223 = vunpack.c.h.b16 %v51
  %v224 = vunpack.c.l.b16 %v52
  %v225 = vunpack.c.h.b16 %v52
  %v226 = vunpack.c.l.b16 %v53
  %v227 = vunpack.c.h.b16 %v53
  %v228 = vunpack.c.l.b16 %v54
  %v229 = vunpack.c.h.b16 %v54
  %v230 = vunpack.c.l.b16 %v55
  %v231 = vunpack.c.h.b16 %v55
  %v232 = vunpack.c.l.b16 %v56
  %v233 = vunpack.c.h.b16 %v56
  %v234 = vunpack.c.l.b16 %v57
  %v235 = vunpack.c.h.b16 %v57
  %v236 = vunpack.c.l.b16 %v58
  %v237 = vunpack.c.h.b16 %v58
  %v238 = vunpack.c.l.b16 %v59
  %v239 = vunpack.c.h.b16 %v59
  %v240 = vunpack.c.l.b16 %v60
  %v241 = vunpack.c.h.b16 %v60
  %v242 = vunpack.c.l.b16 %v61
  %v243 = vunpack.c.h.b16 %v61
  %v244 = vunpack.c.l.b16 %v62
  %v245 = vunpack.c.h.b16 %v62
  %v246 = vunpack.c.l.b16 %v63
  %v247 = vunpack.c.h.b16 %v63
  %v248 = vunpack.c.l.b16 %v64
  %v249 = vunpack.c.h.b16 %v64
  %v250 = vunpack.c.l.b16 %v65
  %v251 = vunpack.c.h.b16 %v65
  %v252 = vunpack.c.l.b16 %v66
  %v253 = vunpack.c.h.b16 %v66
  %v254 = vunpack.c.l.b16 %v67
  %v255 = vunpack.c.h.b16 %v67
  %v256 = vunpack.c.l.b16 %v68
  %v257 = vunpack.c.h.b16 %v68
  %v258 = vunpack.c.l.b16 %v69
  %v259 = vunpack.c.h.b16 %v69
  %v260 = vunpack.c.l.b16 %v70
  %v261 = vunpack.c.h.b16 %v70
  %v262 = vunpack.c.l.b16 %v71
  %v263 = vunpack.c.h.b16 %v71
  %v264 = vunpack.c.l.b16 %v72
  %v265 = vunpack.c.h.b16 %v72
  %v266 = vunpack.c.l.b16 %v73
  %v267 = vunpack.c.h.b16 %v73
  %v268 = vunpack.c.l.b16 %v74
  %v269 = vunpack.c.h.b16 %v74
  %v270 = vunpack.c.l.b16 %v75
  %v271 = vunpack.c.h.b16 %v75
  %v272 = vunpack.c.l.b16 %v76
  %v273 = vunpack.c.h.b16 %v76
  %v274 = vunpack.c.l.b16 %v77
  %v275 = vunpack.c.h.b16 %v77
  %v276 = vunpack.c.l.b16 %v78
  %v277 = vunpack.c.h.b16 %v78
  %v278 = vunpack.c.l.b16 %v79
  %v279 = vunpack.c.h.b16 %v79
  %v280 = vunpack.c.l.b16 %v80
  %v281 = vunpack.c.h.b16 %v80
  %v282 = vunpack.c.l.b16 %v81
  %v283 = vunpack.c.h.b16 %v81
  %v284 = vunpack.c.l.b16 %v82
  %v285 = vunpack.c.h.b16 %v82
  %v286 = vunpack.c.l.b16 %v83
  %v287 = vunpack.c.h.b16 %v83
  %v288 = vunpack.c.l.b16 %v84
  %v289 = vunpack.c.h.b16 %v84
  %v290 = vpack.c.b16 %v166, %v162
  %v291 = vpack.c.b16 %v167, %v163
  %v292 = vpack.c.b16 %v168, %v164
  %v293 = vpack.c.b16 %v169, %v165
  %v294 = vpack.c.b16 %v174, %v170
  %v295 = vpack.c.b16 %v175, %v171
  %v296 = vpack.c.b16 %v176, %v172
  %v297 = vpack.c.b16 %v177, %v173
  %v298 = vpack.c.b16 %v182, %v178
  %v299 = vpack.c.b16 %v183, %v179
  %v300 = vpack.c.b16 %v184, %v180
  %v301 = vpack.c.b16 %v185, %v181
  %v302 = vpack.c.b16 %v190, %v186
  %v303 = vpack.c.b16 %v191, %v187
  %v304 = vpack.c.b16 %v192, %v188
  %v305 = vpack.c.b16 %v193, %v189
  %v306 = vpack.c.b16 %v198, %v194
  %v307 = vpack.c.b16 %v199, %v195
  %v308 = vpack.c.b16 %v200, %v196
  %v309 = vpack.c.b16 %v201, %v197
  %v310 = vpack.c.b16 %v206, %v202
  %v311 = vpack.c.b16 %v207, %v203
  %v312 = vpack.c.b16 %v208, %v204
  %v313 = vpack.c.b16 %v209, %v205
  %v314 = vpack.c.b16 %v214, %v210
  %v315 = vpack.c.b16 %v215, %v211
  %v316 = vpack.c.b16 %v216, %v212
  %v317 = vpack.c.b16 %v217, %v213
  %v318 = vpack.c.b16 %v222, %v218
  %v319 = vpack.c.b16 %v223, %v219
  %v320 = vpack.c.b16 %v224, %v220
  %v321 = vpack.c.b16 %v225, %v221
  %v322 = vpack.c.b16 %v230, %v226
  %v323 = vpack.c.b16 %v231, %v227
  %v324 = vpack.c.b16 %v232, %v228
  %v325 = vpack.c.b16 %v233, %v229
  %v326 = vpack.c.b16 %v238, %v234
  %v327 = vpack.c.b16 %v239, %v235
  %v328 = vpack.c.b16 %v240, %v236
  %v329 = vpack.c.b16 %v241, %v237
  %v330 = vpack.c.b16 %v246, %v242
  %v331 = vpack.c.b16 %v247, %v243
  %v332 = vpack.c.b16 %v248, %v244
  %v333 = vpack.c.b16 %v249, %v245
  %v334 = vpack.c.b16 %v254, %v250
  %v335 = vpack.c.b16 %v255, %v251
  %v336 = vpack.c.b16 %v256, %v252
  %v337 = vpack.c.b16 %v257, %v253
  %v338 = vpack.c.b16 %v262, %v258
  %v339 = vpack.c.b16 %v263, %v259
  %v340 = vpack.c.b16 %v264, %v260
  %v341 = vpack.c.b16 %v265, %v261
  %v342 = vpack.c.b16 %v270, %v266
  %v343 = vpack.c.b16 %v271, %v267
  %v344 = vpack.c.b16 %v272, %v268
  %v345 = vpack.c.b16 %v273, %v269
  %v346 = vpack.c.b16 %v278, %v274
  %v347 = vpack.c.b16 %v279, %v275
  %v348 = vpack.c.b16 %v280, %v276
  %v349 = vpack.c.b16 %v281, %v277
  %v350 = vpack.c.b16 %v286, %v282
  %v351 = vpack.c.b16 %v287, %v283
  %v352 = vpack.c.b16 %v288, %v284
  %v353 = vpack.c.b16 %v289, %v285
  %418 = vmatprep.subr.bf16.mxu0 %v319
  %419 = vmatpush1.bf16.msra.mxu0 %v318
  %420 = vmatprep.subr.bf16.mxu0 %v315
  %421 = vmatpush1.bf16.msra.mxu0 %v314
  %422 = vmatprep.subr.bf16.mxu0 %v311
  %423 = vmatpush1.bf16.msra.mxu0 %v310
  %424 = vmatprep.subr.bf16.mxu0 %v307
  %425 = vmatpush1.bf16.msra.mxu0 %v306
  %426 = vmatprep.subr.bf16.mxu0 %v303
  %427 = vmatpush1.bf16.msra.mxu0 %v302
  %428 = vmatprep.subr.bf16.mxu0 %v299
  %429 = vmatpush1.bf16.msra.mxu0 %v298
  %430 = vmatprep.subr.bf16.mxu0 %v295
  %431 = vmatpush1.bf16.msra.mxu0 %v294
  %432 = vmatprep.subr.bf16.mxu0 %v291
  %433 = vmatpush1.bf16.msra.mxu0 %v290
  %434 = vmatprep.subr.bf16.mxu0 %v351
  %435 = vmatpush2.bf16.msra.mxu0 %v350
  %436 = vmatprep.subr.bf16.mxu0 %v347
  %437 = vmatpush2.bf16.msra.mxu0 %v346
  %438 = vmatprep.subr.bf16.mxu0 %v343
  %439 = vmatpush2.bf16.msra.mxu0 %v342
  %440 = vmatprep.subr.bf16.mxu0 %v339
  %441 = vmatpush2.bf16.msra.mxu0 %v338
  %442 = vmatprep.subr.bf16.mxu0 %v335
  %443 = vmatpush2.bf16.msra.mxu0 %v334
  %444 = vmatprep.subr.bf16.mxu0 %v331
  %445 = vmatpush2.bf16.msra.mxu0 %v330
  %446 = vmatprep.subr.bf16.mxu0 %v327
  %447 = vmatpush2.bf16.msra.mxu0 %v326
  %448 = vmatprep.subr.bf16.mxu0 %v323
  %449 = vmatpush2.bf16.msra.mxu0 %v322
  %450 = vmatprep.mubr.bf16.mxu0 %v95
  %451 = vmatmul.mubr.bf16.gmra.mxu0 %v94
  %v452 = vpop.f32.mrf.mxu0
  %v453 = vadd.f32 %v89, %v452
  %v454 = vpop.f32.mrf.mxu0
  %v455 = vadd.f32 %v89, %v454
  %v456 = vpop.f32.mrf.mxu0
  %v457 = vpop.f32.mrf.mxu0
  %458 = vdwg.mxu0
  %459 = vmatprep.subr.bf16.mxu0 %v321
  %460 = vmatpush1.bf16.msra.mxu0 %v320
  %461 = vmatprep.subr.bf16.mxu0 %v317
  %462 = vmatpush1.bf16.msra.mxu0 %v316
  %463 = vmatprep.subr.bf16.mxu0 %v313
  %464 = vmatpush1.bf16.msra.mxu0 %v312
  %465 = vmatprep.subr.bf16.mxu0 %v309
  %466 = vmatpush1.bf16.msra.mxu0 %v308
  %467 = vmatprep.subr.bf16.mxu0 %v305
  %468 = vmatpush1.bf16.msra.mxu0 %v304
  %469 = vmatprep.subr.bf16.mxu0 %v301
  %470 = vmatpush1.bf16.msra.mxu0 %v300
  %471 = vmatprep.subr.bf16.mxu0 %v297
  %472 = vmatpush1.bf16.msra.mxu0 %v296
  %473 = vmatprep.subr.bf16.mxu0 %v293
  %474 = vmatpush1.bf16.msra.mxu0 %v292
  %475 = vmatprep.subr.bf16.mxu0 %v353
  %476 = vmatpush2.bf16.msra.mxu0 %v352
  %477 = vmatprep.subr.bf16.mxu0 %v349
  %478 = vmatpush2.bf16.msra.mxu0 %v348
  %479 = vmatprep.subr.bf16.mxu0 %v345
  %480 = vmatpush2.bf16.msra.mxu0 %v344
  %481 = vmatprep.subr.bf16.mxu0 %v341
  %482 = vmatpush2.bf16.msra.mxu0 %v340
  %483 = vmatprep.subr.bf16.mxu0 %v337
  %484 = vmatpush2.bf16.msra.mxu0 %v336
  %485 = vmatprep.subr.bf16.mxu0 %v333
  %486 = vmatpush2.bf16.msra.mxu0 %v332
  %487 = vmatprep.subr.bf16.mxu0 %v329
  %488 = vmatpush2.bf16.msra.mxu0 %v328
  %489 = vmatprep.subr.bf16.mxu0 %v325
  %490 = vmatpush2.bf16.msra.mxu0 %v324
  %491 = vmatprep.mubr.bf16.mxu0 %v95
  %492 = vmatmul.mubr.bf16.gmra.mxu0 %v94
  %v493 = vpop.f32.mrf.mxu0
  %v494 = vadd.f32 %v89, %v493
  %v495 = vpop.f32.mrf.mxu0
  %v496 = vadd.f32 %v89, %v495
  %v497 = vpop.f32.mrf.mxu0
  %v498 = vpop.f32.mrf.mxu0
  %499 = vdwg.mxu0
  %v500 = vadd.f32 %v453, %v455
  %v501 = vadd.f32 %v500, %v494
  %v502 = vadd.f32 %v501, %v496
  %503 = vadd.xlane.f32.xlu0 %v502
  %v504 = vpop.xlane.xlu0 %503
  %v505 = vmul.f32 %v504, 0.001953125
  %v506 = vsub.f32 %v453, %v505
  %v507 = vsub.f32 %v455, %v505
  %v508 = vsub.f32 %v494, %v505
  %v509 = vsub.f32 %v496, %v505
  %v510 = vmul.f32 %v506, %v506
  %v511 = vmul.f32 %v507, %v507
  %v512 = vmul.f32 %v508, %v508
  %v513 = vmul.f32 %v509, %v509
  %v514 = vadd.f32 %v510, %v511
  %v515 = vadd.f32 %v514, %v512
  %v516 = vadd.f32 %v515, %v513
  %517 = vadd.xlane.f32.xlu0 %v516
  %v518 = vpop.xlane.xlu0 %517
  %v519 = vmul.f32 %v518, 0.001953125
  %v520 = vld [vmem:[%s3] sm:$0xff]
  %v521 = vadd.f32 %v519, 1e-05
  %v522 = vrsqrt.pop %v521
  %v523 = vmul.f32 %v520, %v522
  %525 = vset.pattern.permute.xlu0 0
  %526 = vperm.xlu0 %525, %v523
  %v527 = vpop.permute.xlu0 %526
  %v529 = vmul.f32 %v506, %v527
  %v530 = vmul.f32 %v507, %v527
  %v531 = vmul.f32 %v508, %v527
  %v532 = vmul.f32 %v509, %v527
  %v533 = vld [vmem:[%s4] sm:$0xff]
  %535 = vset.pattern.permute.xlu0 0
  %536 = vperm.xlu0 %535, %v533
  %v537 = vpop.permute.xlu0 %536
  %v539 = vadd.f32 %v529, %v537
  %v540 = vadd.f32 %v530, %v537
  %v541 = vadd.f32 %v531, %v537
  %v542 = vadd.f32 %v532, %v537
  %v543 = vmax.f32 %v539, 0.0
  %v544 = vmax.f32 %v540, 0.0
  %v545 = vmax.f32 %v541, 0.0
  %v546 = vmax.f32 %v542, 0.0
  %547 = vst [vmem:[%s5] sm:$0xff] %v543
  %548 = vst [vmem:[%s5 + $0x8] sm:$0xff] %v544
  %549 = vst [vmem:[%s5 + $0x10] sm:$0xff] %v545
  %550 = vst [vmem:[%s5 + $0x18] sm:$0xff] %v546
  // Predicated region
  $region22: #{generator_forward.6} parent=0 // pred_check
    _
  $region23: #{generator_forward.6} parent=0 // pred_check_branch
    %552 = sbr.rel (0) target = $region25
  $region24: #{generator_forward.6} parent=0 // pred_region
    _
  $region25: #{generator_forward.6} parent=0 // pred_fallthru
    _
  // Predicated region
  $region26: #{generator_forward.6} parent=0 // pred_check
    _
  $region27: #{generator_forward.6} parent=0 // pred_check_branch
    %554 = sbr.rel (0) target = $region29
  $region28: #{generator_forward.6} parent=0 // pred_region
    _
  $region29: #{generator_forward.6} parent=0 // pred_fallthru
    _

// kernel: generator_forward.7
$region0: #{generator_forward.7}
  #allocation0 [shape = 'u32[]', space=smem, size = 0x4, offset = 0x4, fixed_abs, tag = 'smem constant byte address 0x4 - core index']
  #allocation1 [shape = 'u32[144,128]{1,0:T(1,128)}', space=vmem, size = 0x12000, scoped, tag = 'internal scratch']
  %s0 = inlined_call_operand.vmem [shape: bf16[3,128], index: 0, kind: input, shape index: {}]
  %s1 = inlined_call_operand.vmem [shape: bf16[128,2048], index: 1, kind: input, shape index: {}]
  %s2 = inlined_call_operand.vmem [shape: f32[3,1], index: 2, kind: input, shape index: {}, may-alias: {2,4}]
  %s3 = inlined_call_operand.vmem [shape: f32[3,1], index: 3, kind: input, shape index: {}]
  %s4 = inlined_call_operand.vmem [shape: f32[3,1], index: 4, kind: input, shape index: {}, may-alias: {2,4}]
  %s5 = inlined_call_operand.vmem [shape: f32[3,2048], index: 5, kind: output, shape index: {}]
  %s6 = sld [smem:[#allocation0]]
  $region30: #{generator_forward.7} parent=0
    _
  %s8 = ssub.s32 1, %s6
  %s9 = scalar_select 0, %s8, %s6
  // Predicated region
  $region2: #{generator_forward.7} parent=0 // pred_check
    _
  $region3: #{generator_forward.7} parent=0 // pred_check_branch
    %11 = sbr.rel (0) target = $region5
  $region4: #{generator_forward.7} parent=0 // pred_region
    _
  $region5: #{generator_forward.7} parent=0 // pred_fallthru
    _
  // Predicated region
  $region6: #{generator_forward.7} parent=0 // pred_check
    _
  $region7: #{generator_forward.7} parent=0 // pred_check_branch
    %13 = sbr.rel (0) target = $region9
  $region8: #{generator_forward.7} parent=0 // pred_region
    _
  $region9: #{generator_forward.7} parent=0 // pred_fallthru
    _
  // Predicated region
  $region10: #{generator_forward.7} parent=0 // pred_check
    _
  $region11: #{generator_forward.7} parent=0 // pred_check_branch
    %15 = sbr.rel (0) target = $region13
  $region12: #{generator_forward.7} parent=0 // pred_region
    _
  $region13: #{generator_forward.7} parent=0 // pred_fallthru
    _
  // Predicated region
  $region14: #{generator_forward.7} parent=0 // pred_check
    _
  $region15: #{generator_forward.7} parent=0 // pred_check_branch
    %17 = sbr.rel (0) target = $region17
  $region16: #{generator_forward.7} parent=0 // pred_region
    _
  $region17: #{generator_forward.7} parent=0 // pred_fallthru
    _
  // Predicated region
  $region18: #{generator_forward.7} parent=0 // pred_check
    _
  $region19: #{generator_forward.7} parent=0 // pred_check_branch
    %19 = sbr.rel (0) target = $region21
  $region20: #{generator_forward.7} parent=0 // pred_region
    _
  $region21: #{generator_forward.7} parent=0 // pred_fallthru
    _
  %v21 = vld [vmem:[%s0] sm:$0x3]
  %v22 = vld [vmem:[%s1] sm:$0xff]
  %v23 = vld [vmem:[%s1 + $0x8] sm:$0xff]
  %v24 = vld [vmem:[%s1 + $0x10] sm:$0xff]
  %v25 = vld [vmem:[%s1 + $0x18] sm:$0xff]
  %v26 = vld [vmem:[%s1 + $0x20] sm:$0xff]
  %v27 = vld [vmem:[%s1 + $0x28] sm:$0xff]
  %v28 = vld [vmem:[%s1 + $0x30] sm:$0xff]
  %v29 = vld [vmem:[%s1 + $0x38] sm:$0xff]
  %v30 = vld [vmem:[%s1 + $0x40] sm:$0xff]
  %v31 = vld [vmem:[%s1 + $0x48] sm:$0xff]
  %v32 = vld [vmem:[%s1 + $0x50] sm:$0xff]
  %v33 = vld [vmem:[%s1 + $0x58] sm:$0xff]
  %v34 = vld [vmem:[%s1 + $0x60] sm:$0xff]
  %v35 = vld [vmem:[%s1 + $0x68] sm:$0xff]
  %v36 = vld [vmem:[%s1 + $0x70] sm:$0xff]
  %v37 = vld [vmem:[%s1 + $0x78] sm:$0xff]
  %v38 = vld [vmem:[%s1 + $0x80] sm:$0xff]
  %v39 = vld [vmem:[%s1 + $0x88] sm:$0xff]
  %v40 = vld [vmem:[%s1 + $0x90] sm:$0xff]
  %v41 = vld [vmem:[%s1 + $0x98] sm:$0xff]
  %v42 = vld [vmem:[%s1 + $0xa0] sm:$0xff]
  %v43 = vld [vmem:[%s1 + $0xa8] sm:$0xff]
  %v44 = vld [vmem:[%s1 + $0xb0] sm:$0xff]
  %v45 = vld [vmem:[%s1 + $0xb8] sm:$0xff]
  %v46 = vld [vmem:[%s1 + $0xc0] sm:$0xff]
  %v47 = vld [vmem:[%s1 + $0xc8] sm:$0xff]
  %v48 = vld [vmem:[%s1 + $0xd0] sm:$0xff]
  %v49 = vld [vmem:[%s1 + $0xd8] sm:$0xff]
  %v50 = vld [vmem:[%s1 + $0xe0] sm:$0xff]
  %v51 = vld [vmem:[%s1 + $0xe8] sm:$0xff]
  %v52 = vld [vmem:[%s1 + $0xf0] sm:$0xff]
  %v53 = vld [vmem:[%s1 + $0xf8] sm:$0xff]
  %v54 = vld [vmem:[%s1 + $0x100] sm:$0xff]
  %v55 = vld [vmem:[%s1 + $0x108] sm:$0xff]
  %v56 = vld [vmem:[%s1 + $0x110] sm:$0xff]
  %v57 = vld [vmem:[%s1 + $0x118] sm:$0xff]
  %v58 = vld [vmem:[%s1 + $0x120] sm:$0xff]
  %v59 = vld [vmem:[%s1 + $0x128] sm:$0xff]
  %v60 = vld [vmem:[%s1 + $0x130] sm:$0xff]
  %v61 = vld [vmem:[%s1 + $0x138] sm:$0xff]
  %v62 = vld [vmem:[%s1 + $0x140] sm:$0xff]
  %v63 = vld [vmem:[%s1 + $0x148] sm:$0xff]
  %v64 = vld [vmem:[%s1 + $0x150] sm:$0xff]
  %v65 = vld [vmem:[%s1 + $0x158] sm:$0xff]
  %v66 = vld [vmem:[%s1 + $0x160] sm:$0xff]
  %v67 = vld [vmem:[%s1 + $0x168] sm:$0xff]
  %v68 = vld [vmem:[%s1 + $0x170] sm:$0xff]
  %v69 = vld [vmem:[%s1 + $0x178] sm:$0xff]
  %v70 = vld [vmem:[%s1 + $0x180] sm:$0xff]
  %v71 = vld [vmem:[%s1 + $0x188] sm:$0xff]
  %v72 = vld [vmem:[%s1 + $0x190] sm:$0xff]
  %v73 = vld [vmem:[%s1 + $0x198] sm:$0xff]
  %v74 = vld [vmem:[%s1 + $0x1a0] sm:$0xff]
  %v75 = vld [vmem:[%s1 + $0x1a8] sm:$0xff]
  %v76 = vld [vmem:[%s1 + $0x1b0] sm:$0xff]
  %v77 = vld [vmem:[%s1 + $0x1b8] sm:$0xff]
  %v78 = vld [vmem:[%s1 + $0x1c0] sm:$0xff]
  %v79 = vld [vmem:[%s1 + $0x1c8] sm:$0xff]
  %v80 = vld [vmem:[%s1 + $0x1d0] sm:$0xff]
  %v81 = vld [vmem:[%s1 + $0x1d8] sm:$0xff]
  %v82 = vld [vmem:[%s1 + $0x1e0] sm:$0xff]
  %v83 = vld [vmem:[%s1 + $0x1e8] sm:$0xff]
  %v84 = vld [vmem:[%s1 + $0x1f0] sm:$0xff]
  %v85 = vld [vmem:[%s1 + $0x1f8] sm:$0xff]
  %v86 = vld [vmem:[%s1 + $0x200] sm:$0xff]
  %v87 = vld [vmem:[%s1 + $0x208] sm:$0xff]
  %v88 = vld [vmem:[%s1 + $0x210] sm:$0xff]
  %v89 = vld [vmem:[%s1 + $0x218] sm:$0xff]
  %v90 = vld [vmem:[%s1 + $0x220] sm:$0xff]
  %v91 = vld [vmem:[%s1 + $0x228] sm:$0xff]
  %v92 = vld [vmem:[%s1 + $0x230] sm:$0xff]
  %v93 = vld [vmem:[%s1 + $0x238] sm:$0xff]
  %v94 = vld [vmem:[%s1 + $0x240] sm:$0xff]
  %v95 = vld [vmem:[%s1 + $0x248] sm:$0xff]
  %v96 = vld [vmem:[%s1 + $0x250] sm:$0xff]
  %v97 = vld [vmem:[%s1 + $0x258] sm:$0xff]
  %v98 = vld [vmem:[%s1 + $0x260] sm:$0xff]
  %v99 = vld [vmem:[%s1 + $0x268] sm:$0xff]
  %v100 = vld [vmem:[%s1 + $0x270] sm:$0xff]
  %v101 = vld [vmem:[%s1 + $0x278] sm:$0xff]
  %v102 = vld [vmem:[%s1 + $0x280] sm:$0xff]
  %v103 = vld [vmem:[%s1 + $0x288] sm:$0xff]
  %v104 = vld [vmem:[%s1 + $0x290] sm:$0xff]
  %v105 = vld [vmem:[%s1 + $0x298] sm:$0xff]
  %v106 = vld [vmem:[%s1 + $0x2a0] sm:$0xff]
  %v107 = vld [vmem:[%s1 + $0x2a8] sm:$0xff]
  %v108 = vld [vmem:[%s1 + $0x2b0] sm:$0xff]
  %v109 = vld [vmem:[%s1 + $0x2b8] sm:$0xff]
  %v110 = vld [vmem:[%s1 + $0x2c0] sm:$0xff]
  %v111 = vld [vmem:[%s1 + $0x2c8] sm:$0xff]
  %v112 = vld [vmem:[%s1 + $0x2d0] sm:$0xff]
  %v113 = vld [vmem:[%s1 + $0x2d8] sm:$0xff]
  %v114 = vld [vmem:[%s1 + $0x2e0] sm:$0xff]
  %v115 = vld [vmem:[%s1 + $0x2e8] sm:$0xff]
  %v116 = vld [vmem:[%s1 + $0x2f0] sm:$0xff]
  %v117 = vld [vmem:[%s1 + $0x2f8] sm:$0xff]
  %v118 = vld [vmem:[%s1 + $0x300] sm:$0xff]
  %v119 = vld [vmem:[%s1 + $0x308] sm:$0xff]
  %v120 = vld [vmem:[%s1 + $0x310] sm:$0xff]
  %v121 = vld [vmem:[%s1 + $0x318] sm:$0xff]
  %v122 = vld [vmem:[%s1 + $0x320] sm:$0xff]
  %v123 = vld [vmem:[%s1 + $0x328] sm:$0xff]
  %v124 = vld [vmem:[%s1 + $0x330] sm:$0xff]
  %v125 = vld [vmem:[%s1 + $0x338] sm:$0xff]
  %v126 = vld [vmem:[%s1 + $0x340] sm:$0xff]
  %v127 = vld [vmem:[%s1 + $0x348] sm:$0xff]
  %v128 = vld [vmem:[%s1 + $0x350] sm:$0xff]
  %v129 = vld [vmem:[%s1 + $0x358] sm:$0xff]
  %v130 = vld [vmem:[%s1 + $0x360] sm:$0xff]
  %v131 = vld [vmem:[%s1 + $0x368] sm:$0xff]
  %v132 = vld [vmem:[%s1 + $0x370] sm:$0xff]
  %v133 = vld [vmem:[%s1 + $0x378] sm:$0xff]
  %v134 = vld [vmem:[%s1 + $0x380] sm:$0xff]
  %v135 = vld [vmem:[%s1 + $0x388] sm:$0xff]
  %v136 = vld [vmem:[%s1 + $0x390] sm:$0xff]
  %v137 = vld [vmem:[%s1 + $0x398] sm:$0xff]
  %v138 = vld [vmem:[%s1 + $0x3a0] sm:$0xff]
  %v139 = vld [vmem:[%s1 + $0x3a8] sm:$0xff]
  %v140 = vld [vmem:[%s1 + $0x3b0] sm:$0xff]
  %v141 = vld [vmem:[%s1 + $0x3b8] sm:$0xff]
  %v142 = vld [vmem:[%s1 + $0x3c0] sm:$0xff]
  %v143 = vld [vmem:[%s1 + $0x3c8] sm:$0xff]
  %v144 = vld [vmem:[%s1 + $0x3d0] sm:$0xff]
  %v145 = vld [vmem:[%s1 + $0x3d8] sm:$0xff]
  %v146 = vld [vmem:[%s1 + $0x3e0] sm:$0xff]
  %v147 = vld [vmem:[%s1 + $0x3e8] sm:$0xff]
  %v148 = vld [vmem:[%s1 + $0x3f0] sm:$0xff]
  %v149 = vld [vmem:[%s1 + $0x3f8] sm:$0xff]
  %v150 = vld [vmem:[%s2] sm:$0x7]
  %152 = vset.pattern.permute.xlu0 0
  %153 = vperm.xlu0 %152, %v150
  %v154 = vpop.permute.xlu0 %153
  %v284 = vunpack.c.l.b16 %v22
  %v285 = vunpack.c.h.b16 %v22
  %v286 = vunpack.c.l.b16 %v23
  %v287 = vunpack.c.h.b16 %v23
  %v288 = vunpack.c.l.b16 %v24
  %v289 = vunpack.c.h.b16 %v24
  %v290 = vunpack.c.l.b16 %v25
  %v291 = vunpack.c.h.b16 %v25
  %v292 = vunpack.c.l.b16 %v26
  %v293 = vunpack.c.h.b16 %v26
  %v294 = vunpack.c.l.b16 %v27
  %v295 = vunpack.c.h.b16 %v27
  %v296 = vunpack.c.l.b16 %v28
  %v297 = vunpack.c.h.b16 %v28
  %v298 = vunpack.c.l.b16 %v29
  %v299 = vunpack.c.h.b16 %v29
  %v300 = vunpack.c.l.b16 %v30
  %v301 = vunpack.c.h.b16 %v30
  %v302 = vunpack.c.l.b16 %v31
  %v303 = vunpack.c.h.b16 %v31
  %v304 = vunpack.c.l.b16 %v32
  %v305 = vunpack.c.h.b16 %v32
  %v306 = vunpack.c.l.b16 %v33
  %v307 = vunpack.c.h.b16 %v33
  %v308 = vunpack.c.l.b16 %v34
  %v309 = vunpack.c.h.b16 %v34
  %v310 = vunpack.c.l.b16 %v35
  %v311 = vunpack.c.h.b16 %v35
  %v312 = vunpack.c.l.b16 %v36
  %v313 = vunpack.c.h.b16 %v36
  %v314 = vunpack.c.l.b16 %v37
  %v315 = vunpack.c.h.b16 %v37
  %v316 = vunpack.c.l.b16 %v38
  %v317 = vunpack.c.h.b16 %v38
  %v318 = vunpack.c.l.b16 %v39
  %v319 = vunpack.c.h.b16 %v39
  %v320 = vunpack.c.l.b16 %v40
  %v321 = vunpack.c.h.b16 %v40
  %v322 = vunpack.c.l.b16 %v41
  %v323 = vunpack.c.h.b16 %v41
  %v324 = vunpack.c.l.b16 %v42
  %v325 = vunpack.c.h.b16 %v42
  %v326 = vunpack.c.l.b16 %v43
  %v327 = vunpack.c.h.b16 %v43
  %v328 = vunpack.c.l.b16 %v44
  %v329 = vunpack.c.h.b16 %v44
  %v330 = vunpack.c.l.b16 %v45
  %v331 = vunpack.c.h.b16 %v45
  %v332 = vunpack.c.l.b16 %v46
  %v333 = vunpack.c.h.b16 %v46
  %v334 = vunpack.c.l.b16 %v47
  %v335 = vunpack.c.h.b16 %v47
  %v336 = vunpack.c.l.b16 %v48
  %v337 = vunpack.c.h.b16 %v48
  %v338 = vunpack.c.l.b16 %v49
  %v339 = vunpack.c.h.b16 %v49
  %v340 = vunpack.c.l.b16 %v50
  %v341 = vunpack.c.h.b16 %v50
  %v342 = vunpack.c.l.b16 %v51
  %v343 = vunpack.c.h.b16 %v51
  %v344 = vunpack.c.l.b16 %v52
  %v345 = vunpack.c.h.b16 %v52
  %v346 = vunpack.c.l.b16 %v53
  %v347 = vunpack.c.h.b16 %v53
  %v348 = vunpack.c.l.b16 %v54
  %v349 = vunpack.c.h.b16 %v54
  %v350 = vunpack.c.l.b16 %v55
  %v351 = vunpack.c.h.b16 %v55
  %v352 = vunpack.c.l.b16 %v56
  %v353 = vunpack.c.h.b16 %v56
  %v354 = vunpack.c.l.b16 %v57
  %v355 = vunpack.c.h.b16 %v57
  %v356 = vunpack.c.l.b16 %v58
  %v357 = vunpack.c.h.b16 %v58
  %v358 = vunpack.c.l.b16 %v59
  %v359 = vunpack.c.h.b16 %v59
  %v360 = vunpack.c.l.b16 %v60
  %v361 = vunpack.c.h.b16 %v60
  %v362 = vunpack.c.l.b16 %v61
  %v363 = vunpack.c.h.b16 %v61
  %v364 = vunpack.c.l.b16 %v62
  %v365 = vunpack.c.h.b16 %v62
  %v366 = vunpack.c.l.b16 %v63
  %v367 = vunpack.c.h.b16 %v63
  %v368 = vunpack.c.l.b16 %v64
  %v369 = vunpack.c.h.b16 %v64
  %v370 = vunpack.c.l.b16 %v65
  %v371 = vunpack.c.h.b16 %v65
  %v372 = vunpack.c.l.b16 %v66
  %v373 = vunpack.c.h.b16 %v66
  %v374 = vunpack.c.l.b16 %v67
  %v375 = vunpack.c.h.b16 %v67
  %v376 = vunpack.c.l.b16 %v68
  %v377 = vunpack.c.h.b16 %v68
  %v378 = vunpack.c.l.b16 %v69
  %v379 = vunpack.c.h.b16 %v69
  %v380 = vunpack.c.l.b16 %v70
  %v381 = vunpack.c.h.b16 %v70
  %v382 = vunpack.c.l.b16 %v71
  %v383 = vunpack.c.h.b16 %v71
  %v384 = vunpack.c.l.b16 %v72
  %v385 = vunpack.c.h.b16 %v72
  %v386 = vunpack.c.l.b16 %v73
  %v387 = vunpack.c.h.b16 %v73
  %v388 = vunpack.c.l.b16 %v74
  %v389 = vunpack.c.h.b16 %v74
  %v390 = vunpack.c.l.b16 %v75
  %v391 = vunpack.c.h.b16 %v75
  %v392 = vunpack.c.l.b16 %v76
  %v393 = vunpack.c.h.b16 %v76
  %v394 = vunpack.c.l.b16 %v77
  %v395 = vunpack.c.h.b16 %v77
  %v396 = vunpack.c.l.b16 %v78
  %v397 = vunpack.c.h.b16 %v78
  %v398 = vunpack.c.l.b16 %v79
  %v399 = vunpack.c.h.b16 %v79
  %v400 = vunpack.c.l.b16 %v80
  %v401 = vunpack.c.h.b16 %v80
  %v402 = vunpack.c.l.b16 %v81
  %v403 = vunpack.c.h.b16 %v81
  %v404 = vunpack.c.l.b16 %v82
  %v405 = vunpack.c.h.b16 %v82
  %v406 = vunpack.c.l.b16 %v83
  %v407 = vunpack.c.h.b16 %v83
  %v408 = vunpack.c.l.b16 %v84
  %v409 = vunpack.c.h.b16 %v84
  %v410 = vunpack.c.l.b16 %v85
  %v411 = vunpack.c.h.b16 %v85
  %v412 = vunpack.c.l.b16 %v86
  %v413 = vunpack.c.h.b16 %v86
  %v414 = vunpack.c.l.b16 %v87
  %v415 = vunpack.c.h.b16 %v87
  %v416 = vunpack.c.l.b16 %v88
  %v417 = vunpack.c.h.b16 %v88
  %v418 = vunpack.c.l.b16 %v89
  %v419 = vunpack.c.h.b16 %v89
  %v420 = vunpack.c.l.b16 %v90
  %v421 = vunpack.c.h.b16 %v90
  %v422 = vunpack.c.l.b16 %v91
  %v423 = vunpack.c.h.b16 %v91
  %v424 = vunpack.c.l.b16 %v92
  %v425 = vunpack.c.h.b16 %v92
  %v426 = vunpack.c.l.b16 %v93
  %v427 = vunpack.c.h.b16 %v93
  %v428 = vunpack.c.l.b16 %v94
  %v429 = vunpack.c.h.b16 %v94
  %v430 = vunpack.c.l.b16 %v95
  %v431 = vunpack.c.h.b16 %v95
  %v432 = vunpack.c.l.b16 %v96
  %v433 = vunpack.c.h.b16 %v96
  %v434 = vunpack.c.l.b16 %v97
  %v435 = vunpack.c.h.b16 %v97
  %v436 = vunpack.c.l.b16 %v98
  %v437 = vunpack.c.h.b16 %v98
  %v438 = vunpack.c.l.b16 %v99
  %v439 = vunpack.c.h.b16 %v99
  %v440 = vunpack.c.l.b16 %v100
  %v441 = vunpack.c.h.b16 %v100
  %v442 = vunpack.c.l.b16 %v101
  %v443 = vunpack.c.h.b16 %v101
  %v444 = vunpack.c.l.b16 %v102
  %v445 = vunpack.c.h.b16 %v102
  %v446 = vunpack.c.l.b16 %v103
  %v447 = vunpack.c.h.b16 %v103
  %v448 = vunpack.c.l.b16 %v104
  %v449 = vunpack.c.h.b16 %v104
  %v450 = vunpack.c.l.b16 %v105
  %v451 = vunpack.c.h.b16 %v105
  %v452 = vunpack.c.l.b16 %v106
  %v453 = vunpack.c.h.b16 %v106
  %v454 = vunpack.c.l.b16 %v107
  %v455 = vunpack.c.h.b16 %v107
  %v456 = vunpack.c.l.b16 %v108
  %v457 = vunpack.c.h.b16 %v108
  %v458 = vunpack.c.l.b16 %v109
  %v459 = vunpack.c.h.b16 %v109
  %v460 = vunpack.c.l.b16 %v110
  %v461 = vunpack.c.h.b16 %v110
  %v462 = vunpack.c.l.b16 %v111
  %v463 = vunpack.c.h.b16 %v111
  %v464 = vunpack.c.l.b16 %v112
  %v465 = vunpack.c.h.b16 %v112
  %v466 = vunpack.c.l.b16 %v113
  %v467 = vunpack.c.h.b16 %v113
  %v468 = vunpack.c.l.b16 %v114
  %v469 = vunpack.c.h.b16 %v114
  %v470 = vunpack.c.l.b16 %v115
  %v471 = vunpack.c.h.b16 %v115
  %v472 = vunpack.c.l.b16 %v116
  %v473 = vunpack.c.h.b16 %v116
  %v474 = vunpack.c.l.b16 %v117
  %v475 = vunpack.c.h.b16 %v117
  %v476 = vunpack.c.l.b16 %v118
  %v477 = vunpack.c.h.b16 %v118
  %v478 = vunpack.c.l.b16 %v119
  %v479 = vunpack.c.h.b16 %v119
  %v480 = vunpack.c.l.b16 %v120
  %v481 = vunpack.c.h.b16 %v120
  %v482 = vunpack.c.l.b16 %v121
  %v483 = vunpack.c.h.b16 %v121
  %v484 = vunpack.c.l.b16 %v122
  %v485 = vunpack.c.h.b16 %v122
  %v486 = vunpack.c.l.b16 %v123
  %v487 = vunpack.c.h.b16 %v123
  %v488 = vunpack.c.l.b16 %v124
  %v489 = vunpack.c.h.b16 %v124
  %v490 = vunpack.c.l.b16 %v125
  %v491 = vunpack.c.h.b16 %v125
  %v492 = vunpack.c.l.b16 %v126
  %v493 = vunpack.c.h.b16 %v126
  %v494 = vunpack.c.l.b16 %v127
  %v495 = vunpack.c.h.b16 %v127
  %v496 = vunpack.c.l.b16 %v128
  %v497 = vunpack.c.h.b16 %v128
  %v498 = vunpack.c.l.b16 %v129
  %v499 = vunpack.c.h.b16 %v129
  %v500 = vunpack.c.l.b16 %v130
  %v501 = vunpack.c.h.b16 %v130
  %v502 = vunpack.c.l.b16 %v131
  %v503 = vunpack.c.h.b16 %v131
  %v504 = vunpack.c.l.b16 %v132
  %v505 = vunpack.c.h.b16 %v132
  %v506 = vunpack.c.l.b16 %v133
  %v507 = vunpack.c.h.b16 %v133
  %v508 = vunpack.c.l.b16 %v134
  %v509 = vunpack.c.h.b16 %v134
  %v510 = vunpack.c.l.b16 %v135
  %v511 = vunpack.c.h.b16 %v135
  %v512 = vunpack.c.l.b16 %v136
  %v513 = vunpack.c.h.b16 %v136
  %v514 = vunpack.c.l.b16 %v137
  %v515 = vunpack.c.h.b16 %v137
  %v516 = vunpack.c.l.b16 %v138
  %v517 = vunpack.c.h.b16 %v138
  %v518 = vunpack.c.l.b16 %v139
  %v519 = vunpack.c.h.b16 %v139
  %v520 = vunpack.c.l.b16 %v140
  %v521 = vunpack.c.h.b16 %v140
  %v522 = vunpack.c.l.b16 %v141
  %v523 = vunpack.c.h.b16 %v141
  %v524 = vunpack.c.l.b16 %v142
  %v525 = vunpack.c.h.b16 %v142
  %v526 = vunpack.c.l.b16 %v143
  %v527 = vunpack.c.h.b16 %v143
  %v528 = vunpack.c.l.b16 %v144
  %v529 = vunpack.c.h.b16 %v144
  %v530 = vunpack.c.l.b16 %v145
  %v531 = vunpack.c.h.b16 %v145
  %v532 = vunpack.c.l.b16 %v146
  %v533 = vunpack.c.h.b16 %v146
  %v534 = vunpack.c.l.b16 %v147
  %v535 = vunpack.c.h.b16 %v147
  %v536 = vunpack.c.l.b16 %v148
  %v537 = vunpack.c.h.b16 %v148
  %v538 = vunpack.c.l.b16 %v149
  %v539 = vunpack.c.h.b16 %v149
  %v540 = vpack.c.b16 %v300, %v284
  %v541 = vpack.c.b16 %v301, %v285
  %v542 = vpack.c.b16 %v302, %v286
  %v543 = vpack.c.b16 %v303, %v287
  %v544 = vpack.c.b16 %v304, %v288
  %v545 = vpack.c.b16 %v305, %v289
  %v546 = vpack.c.b16 %v306, %v290
  %v547 = vpack.c.b16 %v307, %v291
  %v548 = vpack.c.b16 %v308, %v292
  %v549 = vpack.c.b16 %v309, %v293
  %v550 = vpack.c.b16 %v310, %v294
  %v551 = vpack.c.b16 %v311, %v295
  %v552 = vpack.c.b16 %v312, %v296
  %v553 = vpack.c.b16 %v313, %v297
  %v554 = vpack.c.b16 %v314, %v298
  %v555 = vpack.c.b16 %v315, %v299
  %v556 = vpack.c.b16 %v332, %v316
  %v557 = vpack.c.b16 %v333, %v317
  %v558 = vpack.c.b16 %v334, %v318
  %v559 = vpack.c.b16 %v335, %v319
  %v560 = vpack.c.b16 %v336, %v320
  %v561 = vpack.c.b16 %v337, %v321
  %v562 = vpack.c.b16 %v338, %v322
  %v563 = vpack.c.b16 %v339, %v323
  %v564 = vpack.c.b16 %v340, %v324
  %v565 = vpack.c.b16 %v341, %v325
  %v566 = vpack.c.b16 %v342, %v326
  %v567 = vpack.c.b16 %v343, %v327
  %v568 = vpack.c.b16 %v344, %v328
  %v569 = vpack.c.b16 %v345, %v329
  %v570 = vpack.c.b16 %v346, %v330
  %v571 = vpack.c.b16 %v347, %v331
  %v572 = vpack.c.b16 %v364, %v348
  %v573 = vpack.c.b16 %v365, %v349
  %v574 = vpack.c.b16 %v366, %v350
  %v575 = vpack.c.b16 %v367, %v351
  %v576 = vpack.c.b16 %v368, %v352
  %v577 = vpack.c.b16 %v369, %v353
  %v578 = vpack.c.b16 %v370, %v354
  %v579 = vpack.c.b16 %v371, %v355
  %v580 = vpack.c.b16 %v372, %v356
  %v581 = vpack.c.b16 %v373, %v357
  %v582 = vpack.c.b16 %v374, %v358
  %v583 = vpack.c.b16 %v375, %v359
  %v584 = vpack.c.b16 %v376, %v360
  %v585 = vpack.c.b16 %v377, %v361
  %v586 = vpack.c.b16 %v378, %v362
  %v587 = vpack.c.b16 %v379, %v363
  %v588 = vpack.c.b16 %v396, %v380
  %v589 = vpack.c.b16 %v397, %v381
  %v590 = vpack.c.b16 %v398, %v382
  %v591 = vpack.c.b16 %v399, %v383
  %v592 = vpack.c.b16 %v400, %v384
  %v593 = vpack.c.b16 %v401, %v385
  %v594 = vpack.c.b16 %v402, %v386
  %v595 = vpack.c.b16 %v403, %v387
  %v596 = vpack.c.b16 %v404, %v388
  %v597 = vpack.c.b16 %v405, %v389
  %v598 = vpack.c.b16 %v406, %v390
  %v599 = vpack.c.b16 %v407, %v391
  %v600 = vpack.c.b16 %v408, %v392
  %v601 = vpack.c.b16 %v409, %v393
  %v602 = vpack.c.b16 %v410, %v394
  %v603 = vpack.c.b16 %v411, %v395
  %v604 = vpack.c.b16 %v428, %v412
  %v605 = vpack.c.b16 %v429, %v413
  %v606 = vpack.c.b16 %v430, %v414
  %v607 = vpack.c.b16 %v431, %v415
  %v608 = vpack.c.b16 %v432, %v416
  %v609 = vpack.c.b16 %v433, %v417
  %v610 = vpack.c.b16 %v434, %v418
  %v611 = vpack.c.b16 %v435, %v419
  %v612 = vpack.c.b16 %v436, %v420
  %v613 = vpack.c.b16 %v437, %v421
  %v614 = vpack.c.b16 %v438, %v422
  %v615 = vpack.c.b16 %v439, %v423
  %v616 = vpack.c.b16 %v440, %v424
  %v617 = vpack.c.b16 %v441, %v425
  %v618 = vpack.c.b16 %v442, %v426
  %v619 = vpack.c.b16 %v443, %v427
  %v620 = vpack.c.b16 %v460, %v444
  %v621 = vpack.c.b16 %v461, %v445
  %v622 = vpack.c.b16 %v462, %v446
  %v623 = vpack.c.b16 %v463, %v447
  %v624 = vpack.c.b16 %v464, %v448
  %v625 = vpack.c.b16 %v465, %v449
  %v626 = vpack.c.b16 %v466, %v450
  %v627 = vpack.c.b16 %v467, %v451
  %v628 = vpack.c.b16 %v468, %v452
  %v629 = vpack.c.b16 %v469, %v453
  %v630 = vpack.c.b16 %v470, %v454
  %v631 = vpack.c.b16 %v471, %v455
  %v632 = vpack.c.b16 %v472, %v456
  %v633 = vpack.c.b16 %v473, %v457
  %v634 = vpack.c.b16 %v474, %v458
  %v635 = vpack.c.b16 %v475, %v459
  %v636 = vpack.c.b16 %v492, %v476
  %v637 = vpack.c.b16 %v493, %v477
  %v638 = vpack.c.b16 %v494, %v478
  %v639 = vpack.c.b16 %v495, %v479
  %v640 = vpack.c.b16 %v496, %v480
  %v641 = vpack.c.b16 %v497, %v481
  %v642 = vpack.c.b16 %v498, %v482
  %v643 = vpack.c.b16 %v499, %v483
  %v644 = vpack.c.b16 %v500, %v484
  %v645 = vpack.c.b16 %v501, %v485
  %v646 = vpack.c.b16 %v502, %v486
  %v647 = vpack.c.b16 %v503, %v487
  %v648 = vpack.c.b16 %v504, %v488
  %v649 = vpack.c.b16 %v505, %v489
  %v650 = vpack.c.b16 %v506, %v490
  %v651 = vpack.c.b16 %v507, %v491
  %v652 = vpack.c.b16 %v524, %v508
  %v653 = vpack.c.b16 %v525, %v509
  %v654 = vpack.c.b16 %v526, %v510
  %v655 = vpack.c.b16 %v527, %v511
  %v656 = vpack.c.b16 %v528, %v512
  %v657 = vpack.c.b16 %v529, %v513
  %v658 = vpack.c.b16 %v530, %v514
  %v659 = vpack.c.b16 %v531, %v515
  %v660 = vpack.c.b16 %v532, %v516
  %v661 = vpack.c.b16 %v533, %v517
  %v662 = vpack.c.b16 %v534, %v518
  %v663 = vpack.c.b16 %v535, %v519
  %v664 = vpack.c.b16 %v536, %v520
  %v665 = vpack.c.b16 %v537, %v521
  %v666 = vpack.c.b16 %v538, %v522
  %v667 = vpack.c.b16 %v539, %v523
  %796 = vmatprep.subr.bf16.mxu0 %v653
  %797 = vmatpush1.bf16.msra.mxu0 %v652
  %798 = vmatprep.subr.bf16.mxu0 %v637
  %799 = vmatpush1.bf16.msra.mxu0 %v636
  %800 = vmatprep.subr.bf16.mxu0 %v621
  %801 = vmatpush1.bf16.msra.mxu0 %v620
  %802 = vmatprep.subr.bf16.mxu0 %v605
  %803 = vmatpush1.bf16.msra.mxu0 %v604
  %804 = vmatprep.subr.bf16.mxu0 %v589
  %805 = vmatpush1.bf16.msra.mxu0 %v588
  %806 = vmatprep.subr.bf16.mxu0 %v573
  %807 = vmatpush1.bf16.msra.mxu0 %v572
  %808 = vmatprep.subr.bf16.mxu0 %v557
  %809 = vmatpush1.bf16.msra.mxu0 %v556
  %810 = vmatprep.subr.bf16.mxu0 %v541
  %811 = vmatpush1.bf16.msra.mxu0 %v540
  %812 = vmatprep.subr.bf16.mxu0 0
  %813 = vmatpush2.bf16.msra.mxu0 0
  %814 = vmatprep.subr.bf16.mxu0 0
  %815 = vmatpush2.bf16.msra.mxu0 0
  %816 = vmatprep.subr.bf16.mxu0 0
  %817 = vmatpush2.bf16.msra.mxu0 0
  %818 = vmatprep.subr.bf16.mxu0 0
  %819 = vmatpush2.bf16.msra.mxu0 0
  %820 = vmatprep.subr.bf16.mxu0 0
  %821 = vmatpush2.bf16.msra.mxu0 0
  %822 = vmatprep.subr.bf16.mxu0 0
  %823 = vmatpush2.bf16.msra.mxu0 0
  %824 = vmatprep.subr.bf16.mxu0 0
  %825 = vmatpush2.bf16.msra.mxu0 0
  %826 = vmatprep.subr.bf16.mxu0 0
  %827 = vmatpush2.bf16.msra.mxu0 0
  %828 = vmatprep.mubr.bf16.mxu0 0
  %829 = vmatmul.mubr.bf16.gmra.mxu0 %v21
  %v830 = vpop.f32.mrf.mxu0
  %v831 = vadd.f32 %v154, %v830
  %v832 = vpop.f32.mrf.mxu0
  %v833 = vadd.f32 %v154, %v832
  %v834 = vpop.f32.mrf.mxu0
  %v835 = vpop.f32.mrf.mxu0
  %836 = vdwg.mxu0
  %837 = vmatprep.subr.bf16.mxu0 %v655
  %838 = vmatpush1.bf16.msra.mxu0 %v654
  %839 = vmatprep.subr.bf16.mxu0 %v639
  %840 = vmatpush1.bf16.msra.mxu0 %v638
  %841 = vmatprep.subr.bf16.mxu0 %v623
  %842 = vmatpush1.bf16.msra.mxu0 %v622
  %843 = vmatprep.subr.bf16.mxu0 %v607
  %844 = vmatpush1.bf16.msra.mxu0 %v606
  %845 = vmatprep.subr.bf16.mxu0 %v591
  %846 = vmatpush1.bf16.msra.mxu0 %v590
  %847 = vmatprep.subr.bf16.mxu0 %v575
  %848 = vmatpush1.bf16.msra.mxu0 %v574
  %849 = vmatprep.subr.bf16.mxu0 %v559
  %850 = vmatpush1.bf16.msra.mxu0 %v558
  %851 = vmatprep.subr.bf16.mxu0 %v543
  %852 = vmatpush1.bf16.msra.mxu0 %v542
  %853 = vmatprep.subr.bf16.mxu0 0
  %854 = vmatpush2.bf16.msra.mxu0 0
  %855 = vmatprep.subr.bf16.mxu0 0
  %856 = vmatpush2.bf16.msra.mxu0 0
  %857 = vmatprep.subr.bf16.mxu0 0
  %858 = vmatpush2.bf16.msra.mxu0 0
  %859 = vmatprep.subr.bf16.mxu0 0
  %860 = vmatpush2.bf16.msra.mxu0 0
  %861 = vmatprep.subr.bf16.mxu0 0
  %862 = vmatpush2.bf16.msra.mxu0 0
  %863 = vmatprep.subr.bf16.mxu0 0
  %864 = vmatpush2.bf16.msra.mxu0 0
  %865 = vmatprep.subr.bf16.mxu0 0
  %866 = vmatpush2.bf16.msra.mxu0 0
  %867 = vmatprep.subr.bf16.mxu0 0
  %868 = vmatpush2.bf16.msra.mxu0 0
  %869 = vmatprep.mubr.bf16.mxu0 0
  %870 = vmatmul.mubr.bf16.gmra.mxu0 %v21
  %v871 = vpop.f32.mrf.mxu0
  %v872 = vadd.f32 %v154, %v871
  %v873 = vpop.f32.mrf.mxu0
  %v874 = vadd.f32 %v154, %v873
  %v875 = vpop.f32.mrf.mxu0
  %v876 = vpop.f32.mrf.mxu0
  %877 = vdwg.mxu0
  %878 = vmatprep.subr.bf16.mxu0 %v657
  %879 = vmatpush1.bf16.msra.mxu0 %v656
  %880 = vmatprep.subr.bf16.mxu0 %v641
  %881 = vmatpush1.bf16.msra.mxu0 %v640
  %882 = vmatprep.subr.bf16.mxu0 %v625
  %883 = vmatpush1.bf16.msra.mxu0 %v624
  %884 = vmatprep.subr.bf16.mxu0 %v609
  %885 = vmatpush1.bf16.msra.mxu0 %v608
  %886 = vmatprep.subr.bf16.mxu0 %v593
  %887 = vmatpush1.bf16.msra.mxu0 %v592
  %888 = vmatprep.subr.bf16.mxu0 %v577
  %889 = vmatpush1.bf16.msra.mxu0 %v576
  %890 = vmatprep.subr.bf16.mxu0 %v561
  %891 = vmatpush1.bf16.msra.mxu0 %v560
  %892 = vmatprep.subr.bf16.mxu0 %v545
  %893 = vmatpush1.bf16.msra.mxu0 %v544
  %894 = vmatprep.subr.bf16.mxu0 0
  %895 = vmatpush2.bf16.msra.mxu0 0
  %896 = vmatprep.subr.bf16.mxu0 0
  %897 = vmatpush2.bf16.msra.mxu0 0
  %898 = vmatprep.subr.bf16.mxu0 0
  %899 = vmatpush2.bf16.msra.mxu0 0
  %900 = vmatprep.subr.bf16.mxu0 0
  %901 = vmatpush2.bf16.msra.mxu0 0
  %902 = vmatprep.subr.bf16.mxu0 0
  %903 = vmatpush2.bf16.msra.mxu0 0
  %904 = vmatprep.subr.bf16.mxu0 0
  %905 = vmatpush2.bf16.msra.mxu0 0
  %906 = vmatprep.subr.bf16.mxu0 0
  %907 = vmatpush2.bf16.msra.mxu0 0
  %908 = vmatprep.subr.bf16.mxu0 0
  %909 = vmatpush2.bf16.msra.mxu0 0
  %910 = vmatprep.mubr.bf16.mxu0 0
  %911 = vmatmul.mubr.bf16.gmra.mxu0 %v21
  %v912 = vpop.f32.mrf.mxu0
  %v913 = vadd.f32 %v154, %v912
  %v914 = vpop.f32.mrf.mxu0
  %v915 = vadd.f32 %v154, %v914
  %v916 = vpop.f32.mrf.mxu0
  %v917 = vpop.f32.mrf.mxu0
  %918 = vdwg.mxu0
  %919 = vmatprep.subr.bf16.mxu0 %v659
  %920 = vmatpush1.bf16.msra.mxu0 %v658
  %921 = vmatprep.subr.bf16.mxu0 %v643
  %922 = vmatpush1.bf16.msra.mxu0 %v642
  %923 = vmatprep.subr.bf16.mxu0 %v627
  %924 = vmatpush1.bf16.msra.mxu0 %v626
  %925 = vmatprep.subr.bf16.mxu0 %v611
  %926 = vmatpush1.bf16.msra.mxu0 %v610
  %927 = vmatprep.subr.bf16.mxu0 %v595
  %928 = vmatpush1.bf16.msra.mxu0 %v594
  %929 = vmatprep.subr.bf16.mxu0 %v579
  %930 = vmatpush1.bf16.msra.mxu0 %v578
  %931 = vmatprep.subr.bf16.mxu0 %v563
  %932 = vmatpush1.bf16.msra.mxu0 %v562
  %933 = vmatprep.subr.bf16.mxu0 %v547
  %934 = vmatpush1.bf16.msra.mxu0 %v546
  %935 = vmatprep.subr.bf16.mxu0 0
  %936 = vmatpush2.bf16.msra.mxu0 0
  %937 = vmatprep.subr.bf16.mxu0 0
  %938 = vmatpush2.bf16.msra.mxu0 0
  %939 = vmatprep.subr.bf16.mxu0 0
  %940 = vmatpush2.bf16.msra.mxu0 0
  %941 = vmatprep.subr.bf16.mxu0 0
  %942 = vmatpush2.bf16.msra.mxu0 0
  %943 = vmatprep.subr.bf16.mxu0 0
  %944 = vmatpush2.bf16.msra.mxu0 0
  %945 = vmatprep.subr.bf16.mxu0 0
  %946 = vmatpush2.bf16.msra.mxu0 0
  %947 = vmatprep.subr.bf16.mxu0 0
  %948 = vmatpush2.bf16.msra.mxu0 0
  %949 = vmatprep.subr.bf16.mxu0 0
  %950 = vmatpush2.bf16.msra.mxu0 0
  %951 = vmatprep.mubr.bf16.mxu0 0
  %952 = vmatmul.mubr.bf16.gmra.mxu0 %v21
  %v953 = vpop.f32.mrf.mxu0
  %v954 = vadd.f32 %v154, %v953
  %v955 = vpop.f32.mrf.mxu0
  %v956 = vadd.f32 %v154, %v955
  %v957 = vpop.f32.mrf.mxu0
  %v958 = vpop.f32.mrf.mxu0
  %959 = vdwg.mxu0
  %960 = vmatprep.subr.bf16.mxu0 %v661
  %961 = vmatpush1.bf16.msra.mxu0 %v660
  %962 = vmatprep.subr.bf16.mxu0 %v645
  %963 = vmatpush1.bf16.msra.mxu0 %v644
  %964 = vmatprep.subr.bf16.mxu0 %v629
  %965 = vmatpush1.bf16.msra.mxu0 %v628
  %966 = vmatprep.subr.bf16.mxu0 %v613
  %967 = vmatpush1.bf16.msra.mxu0 %v612
  %968 = vmatprep.subr.bf16.mxu0 %v597
  %969 = vmatpush1.bf16.msra.mxu0 %v596
  %970 = vmatprep.subr.bf16.mxu0 %v581
  %971 = vmatpush1.bf16.msra.mxu0 %v580
  %972 = vmatprep.subr.bf16.mxu0 %v565
  %973 = vmatpush1.bf16.msra.mxu0 %v564
  %974 = vmatprep.subr.bf16.mxu0 %v549
  %975 = vmatpush1.bf16.msra.mxu0 %v548
  %976 = vmatprep.subr.bf16.mxu0 0
  %977 = vmatpush2.bf16.msra.mxu0 0
  %978 = vmatprep.subr.bf16.mxu0 0
  %979 = vmatpush2.bf16.msra.mxu0 0
  %980 = vmatprep.subr.bf16.mxu0 0
  %981 = vmatpush2.bf16.msra.mxu0 0
  %982 = vmatprep.subr.bf16.mxu0 0
  %983 = vmatpush2.bf16.msra.mxu0 0
  %984 = vmatprep.subr.bf16.mxu0 0
  %985 = vmatpush2.bf16.msra.mxu0 0
  %986 = vmatprep.subr.bf16.mxu0 0
  %987 = vmatpush2.bf16.msra.mxu0 0
  %988 = vmatprep.subr.bf16.mxu0 0
  %989 = vmatpush2.bf16.msra.mxu0 0
  %990 = vmatprep.subr.bf16.mxu0 0
  %991 = vmatpush2.bf16.msra.mxu0 0
  %992 = vmatprep.mubr.bf16.mxu0 0
  %993 = vmatmul.mubr.bf16.gmra.mxu0 %v21
  %v994 = vpop.f32.mrf.mxu0
  %v995 = vadd.f32 %v154, %v994
  %v996 = vpop.f32.mrf.mxu0
  %v997 = vadd.f32 %v154, %v996
  %v998 = vpop.f32.mrf.mxu0
  %v999 = vpop.f32.mrf.mxu0
  %1000 = vdwg.mxu0
  %1001 = vmatprep.subr.bf16.mxu0 %v663
  %1002 = vmatpush1.bf16.msra.mxu0 %v662
  %1003 = vmatprep.subr.bf16.mxu0 %v647
  %1004 = vmatpush1.bf16.msra.mxu0 %v646
  %1005 = vmatprep.subr.bf16.mxu0 %v631
  %1006 = vmatpush1.bf16.msra.mxu0 %v630
  %1007 = vmatprep.subr.bf16.mxu0 %v615
  %1008 = vmatpush1.bf16.msra.mxu0 %v614
  %1009 = vmatprep.subr.bf16.mxu0 %v599
  %1010 = vmatpush1.bf16.msra.mxu0 %v598
  %1011 = vmatprep.subr.bf16.mxu0 %v583
  %1012 = vmatpush1.bf16.msra.mxu0 %v582
  %1013 = vmatprep.subr.bf16.mxu0 %v567
  %1014 = vmatpush1.bf16.msra.mxu0 %v566
  %1015 = vmatprep.subr.bf16.mxu0 %v551
  %1016 = vmatpush1.bf16.msra.mxu0 %v550
  %1017 = vmatprep.subr.bf16.mxu0 0
  %1018 = vmatpush2.bf16.msra.mxu0 0
  %1019 = vmatprep.subr.bf16.mxu0 0
  %1020 = vmatpush2.bf16.msra.mxu0 0
  %1021 = vmatprep.subr.bf16.mxu0 0
  %1022 = vmatpush2.bf16.msra.mxu0 0
  %1023 = vmatprep.subr.bf16.mxu0 0
  %1024 = vmatpush2.bf16.msra.mxu0 0
  %1025 = vmatprep.subr.bf16.mxu0 0
  %1026 = vmatpush2.bf16.msra.mxu0 0
  %1027 = vmatprep.subr.bf16.mxu0 0
  %1028 = vmatpush2.bf16.msra.mxu0 0
  %1029 = vmatprep.subr.bf16.mxu0 0
  %1030 = vmatpush2.bf16.msra.mxu0 0
  %1031 = vmatprep.subr.bf16.mxu0 0
  %1032 = vmatpush2.bf16.msra.mxu0 0
  %1033 = vmatprep.mubr.bf16.mxu0 0
  %1034 = vmatmul.mubr.bf16.gmra.mxu0 %v21
  %v1035 = vpop.f32.mrf.mxu0
  %v1036 = vadd.f32 %v154, %v1035
  %v1037 = vpop.f32.mrf.mxu0
  %v1038 = vadd.f32 %v154, %v1037
  %v1039 = vpop.f32.mrf.mxu0
  %v1040 = vpop.f32.mrf.mxu0
  %1041 = vdwg.mxu0
  %1042 = vmatprep.subr.bf16.mxu0 %v665
  %1043 = vmatpush1.bf16.msra.mxu0 %v664
  %1044 = vmatprep.subr.bf16.mxu0 %v649
  %1045 = vmatpush1.bf16.msra.mxu0 %v648
  %1046 = vmatprep.subr.bf16.mxu0 %v633
  %1047 = vmatpush1.bf16.msra.mxu0 %v632
  %1048 = vmatprep.subr.bf16.mxu0 %v617
  %1049 = vmatpush1.bf16.msra.mxu0 %v616
  %1050 = vmatprep.subr.bf16.mxu0 %v601
  %1051 = vmatpush1.bf16.msra.mxu0 %v600
  %1052 = vmatprep.subr.bf16.mxu0 %v585
  %1053 = vmatpush1.bf16.msra.mxu0 %v584
  %1054 = vmatprep.subr.bf16.mxu0 %v569
  %1055 = vmatpush1.bf16.msra.mxu0 %v568
  %1056 = vmatprep.subr.bf16.mxu0 %v553
  %1057 = vmatpush1.bf16.msra.mxu0 %v552
  %1058 = vmatprep.subr.bf16.mxu0 0
  %1059 = vmatpush2.bf16.msra.mxu0 0
  %1060 = vmatprep.subr.bf16.mxu0 0
  %1061 = vmatpush2.bf16.msra.mxu0 0
  %1062 = vmatprep.subr.bf16.mxu0 0
  %1063 = vmatpush2.bf16.msra.mxu0 0
  %1064 = vmatprep.subr.bf16.mxu0 0
  %1065 = vmatpush2.bf16.msra.mxu0 0
  %1066 = vmatprep.subr.bf16.mxu0 0
  %1067 = vmatpush2.bf16.msra.mxu0 0
  %1068 = vmatprep.subr.bf16.mxu0 0
  %1069 = vmatpush2.bf16.msra.mxu0 0
  %1070 = vmatprep.subr.bf16.mxu0 0
  %1071 = vmatpush2.bf16.msra.mxu0 0
  %1072 = vmatprep.subr.bf16.mxu0 0
  %1073 = vmatpush2.bf16.msra.mxu0 0
  %1074 = vmatprep.mubr.bf16.mxu0 0
  %1075 = vmatmul.mubr.bf16.gmra.mxu0 %v21
  %v1076 = vpop.f32.mrf.mxu0
  %v1077 = vadd.f32 %v154, %v1076
  %v1078 = vpop.f32.mrf.mxu0
  %v1079 = vadd.f32 %v154, %v1078
  %v1080 = vpop.f32.mrf.mxu0
  %v1081 = vpop.f32.mrf.mxu0
  %1082 = vdwg.mxu0
  %1083 = vmatprep.subr.bf16.mxu0 %v667
  %1084 = vmatpush1.bf16.msra.mxu0 %v666
  %1085 = vmatprep.subr.bf16.mxu0 %v651
  %1086 = vmatpush1.bf16.msra.mxu0 %v650
  %1087 = vmatprep.subr.bf16.mxu0 %v635
  %1088 = vmatpush1.bf16.msra.mxu0 %v634
  %1089 = vmatprep.subr.bf16.mxu0 %v619
  %1090 = vmatpush1.bf16.msra.mxu0 %v618
  %1091 = vmatprep.subr.bf16.mxu0 %v603
  %1092 = vmatpush1.bf16.msra.mxu0 %v602
  %1093 = vmatprep.subr.bf16.mxu0 %v587
  %1094 = vmatpush1.bf16.msra.mxu0 %v586
  %1095 = vmatprep.subr.bf16.mxu0 %v571
  %1096 = vmatpush1.bf16.msra.mxu0 %v570
  %1097 = vmatprep.subr.bf16.mxu0 %v555
  %1098 = vmatpush1.bf16.msra.mxu0 %v554
  %1099 = vmatprep.subr.bf16.mxu0 0
  %1100 = vmatpush2.bf16.msra.mxu0 0
  %1101 = vmatprep.subr.bf16.mxu0 0
  %1102 = vmatpush2.bf16.msra.mxu0 0
  %1103 = vmatprep.subr.bf16.mxu0 0
  %1104 = vmatpush2.bf16.msra.mxu0 0
  %1105 = vmatprep.subr.bf16.mxu0 0
  %1106 = vmatpush2.bf16.msra.mxu0 0
  %1107 = vmatprep.subr.bf16.mxu0 0
  %1108 = vmatpush2.bf16.msra.mxu0 0
  %1109 = vmatprep.subr.bf16.mxu0 0
  %1110 = vmatpush2.bf16.msra.mxu0 0
  %1111 = vmatprep.subr.bf16.mxu0 0
  %1112 = vmatpush2.bf16.msra.mxu0 0
  %1113 = vmatprep.subr.bf16.mxu0 0
  %1114 = vmatpush2.bf16.msra.mxu0 0
  %1115 = vmatprep.mubr.bf16.mxu0 0
  %1116 = vmatmul.mubr.bf16.gmra.mxu0 %v21
  %v1117 = vpop.f32.mrf.mxu0
  %v1118 = vadd.f32 %v154, %v1117
  %v1119 = vpop.f32.mrf.mxu0
  %v1120 = vadd.f32 %v154, %v1119
  %v1121 = vpop.f32.mrf.mxu0
  %v1122 = vpop.f32.mrf.mxu0
  %1123 = vdwg.mxu0
  %v1124 = vtanh.pop %v831
  %v1125 = vtanh.pop %v833
  %v1126 = vtanh.pop %v872
  %v1127 = vtanh.pop %v874
  %v1128 = vtanh.pop %v913
  %v1129 = vtanh.pop %v915
  %v1130 = vtanh.pop %v954
  %v1131 = vtanh.pop %v956
  %v1132 = vtanh.pop %v995
  %v1133 = vtanh.pop %v997
  %v1134 = vtanh.pop %v1036
  %v1135 = vtanh.pop %v1038
  %v1136 = vtanh.pop %v1077
  %v1137 = vtanh.pop %v1079
  %v1138 = vtanh.pop %v1118
  %v1139 = vtanh.pop %v1120
  %v1156 = vcombine.low %v1124, %v1125
  %v1157 = vcombine.low %v1126, %v1127
  %v1158 = vcombine.low %v1128, %v1129
  %v1159 = vcombine.low %v1130, %v1131
  %v1160 = vcombine.low %v1132, %v1133
  %v1161 = vcombine.low %v1134, %v1135
  %v1162 = vcombine.low %v1136, %v1137
  %v1163 = vcombine.low %v1138, %v1139
  %1172 = vst [vmem:[%s5] sm:$0x77] %v1156
  %1173 = vst [vmem:[%s5 + $0x8] sm:$0x77] %v1157
  %1174 = vst [vmem:[%s5 + $0x10] sm:$0x77] %v1158
  %1175 = vst [vmem:[%s5 + $0x18] sm:$0x77] %v1159
  %1176 = vst [vmem:[%s5 + $0x20] sm:$0x77] %v1160
  %1177 = vst [vmem:[%s5 + $0x28] sm:$0x77] %v1161
  %1178 = vst [vmem:[%s5 + $0x30] sm:$0x77] %v1162
  %1179 = vst [vmem:[%s5 + $0x38] sm:$0x77] %v1163
  // Predicated region
  $region22: #{generator_forward.7} parent=0 // pred_check
    _
  $region23: #{generator_forward.7} parent=0 // pred_check_branch
    %1181 = sbr.rel (0) target = $region25
  $region24: #{generator_forward.7} parent=0 // pred_region
    _
  $region25: #{generator_forward.7} parent=0 // pred_fallthru
    _
  // Predicated region
  $region26: #{generator_forward.7} parent=0 // pred_check
    _
  $region27: #{generator_forward.7} parent=0 // pred_check_branch
    %1183 = sbr.rel (0) target = $region29
  $region28: #{generator_forward.7} parent=0 // pred_region
    _
  $region29: #{generator_forward.7} parent=0 // pred_fallthru
    _

</llo_original>
